<compile_context>
chip_gen: v7x
topology: tpu7x:2x2x1
jax: 0.10.0
libtpu: 0.0.40
codegen_flags: <defaults>
</compile_context>

<pallas_src>
import functools

import jax
import jax.numpy as jnp
from jax.experimental import pallas as pl
from jax.experimental.pallas import tpu as pltpu


# ----------------------------------------------------------------------------- #
# Kernels
# ----------------------------------------------------------------------------- #
def stats_kernel(p_ref, w_ref, s1_ref, s2_ref):
    """Pass 1: per-tile, per-column sum / sum-of-squares of y = P_tile @ W.

    y is never written to HBM (it is recomputed in pass 2); only the tiny
    partials leave the kernel.

    p_ref : [TM, K]      bf16
    w_ref : [K, C]       bf16 (resident across the grid)
    s1_ref: [1, 1, C]    f32  (sum y)
    s2_ref: [1, 1, C]    f32  (sum y*y)
    """
    y = jnp.dot(p_ref[...], w_ref[...], preferred_element_type=jnp.float32)
    s1_ref[...] = jnp.sum(y, axis=0, keepdims=True)[None]
    s2_ref[...] = jnp.sum(y * y, axis=0, keepdims=True)[None]


def fused_matmul_bn_relu_kernel(p_ref, w_ref, scale_ref, bias_ref, o_ref):
    """Pass 2: o = relu((P_tile @ W) * scale + bias).  f32 epilogue (v5e-safe)."""
    y = jnp.dot(p_ref[...], w_ref[...], preferred_element_type=jnp.float32)
    o_ref[...] = jnp.maximum(y * scale_ref[...] + bias_ref[...], 0.0)


# ----------------------------------------------------------------------------- #
# Helpers
# ----------------------------------------------------------------------------- #
def _round_up(x, m):
    return (x + m - 1) // m * m


def _choose_tile_m(m, k, c, tile_m_max=2048, vmem_budget=16 * 1024 * 1024):
    """Largest 128-multiple tile that (a) leaves >= 2 grid steps when possible
    (v7x megacore) and (b) keeps the double-buffered working set under budget."""
    tm = min(tile_m_max, _round_up(max((m + 1) // 2, 128), 128))
    # double-buffered bf16 patches in + f32 out per step
    while tm > 128 and 2 * tm * (2 * k + 4 * c) > vmem_budget:
        tm = _round_up(tm // 2, 128)
    return tm


# ----------------------------------------------------------------------------- #
# Wrapper
# ----------------------------------------------------------------------------- #
def basic_transconv2d(x_nchw, weight_iohw, gamma, beta, *, stride, padding,
                      tile_m_max=2048, eps=1e-3):
    """BasicTransConv2d forward.

    x_nchw     : [N, Cin, H, W]        (PyTorch NCHW)
    weight_iohw: [Cin, Cout, KH, KW]   (PyTorch ConvTranspose2d layout)
    Returns NCHW output [N, Cout, (H-1)*s - 2p + KH, (W-1)*s - 2p + KW], f32.
    """
    cin, cout, kh, kw = weight_iohw.shape
    n, _, h, w = x_nchw.shape

    fast = (kh == stride and kw == stride and padding == 0)

    if fast:
        # --- sub-pixel / pixel-shuffle decomposition (k == s, p == 0) -------- #
        # out[n, co, ih*s+dy, iw*s+dx] = sum_ci x[n, ci, ih, iw] * w[ci, co, dy, dx]
        # -> single [N*H*W, Cin] @ [Cin, Cout*k*k] matmul + depth-to-space.
        patches = jnp.transpose(x_nchw, (0, 2, 3, 1)).reshape(n * h * w, cin)
        patches = patches.astype(jnp.bfloat16)
        w2d = weight_iohw.reshape(cin, cout * kh * kw).astype(jnp.bfloat16)
        group = kh * kw                       # phase columns per BN channel
        oh, ow = h * stride, w * stride
    else:
        # --- general path: stride-1 conv over the zero-dilated, edge-padded
        #     input with the flipped / channel-swapped kernel, im2col'd -------- #
        assert padding <= kh - 1 and padding <= kw - 1, "padding must be <= kernel-1"
        x_nhwc = jnp.transpose(x_nchw, (0, 2, 3, 1)).astype(jnp.bfloat16)
        ph, pw = kh - 1 - padding, kw - 1 - padding
        xp = jax.lax.pad(
            x_nhwc, jnp.asarray(0.0, x_nhwc.dtype),
            [(0, 0, 0), (ph, ph, stride - 1), (pw, pw, stride - 1), (0, 0, 0)])
        oh = (h - 1) * stride - 2 * padding + kh
        ow = (w - 1) * stride - 2 * padding + kw
        # TODO(synk): gather the kh*kw taps inside the kernel with shifted
        # index_maps (grid over (m_tile, kh, kw)) instead of materializing the
        # im2col copy in HBM.
        cols = []
        for i in range(kh):
            for j in range(kw):
                cols.append(xp[:, i:i + oh, j:j + ow, :])
        patches = jnp.concatenate(cols, axis=-1).reshape(n * oh * ow, kh * kw * cin)
        w_conv = jnp.transpose(weight_iohw, (1, 0, 2, 3))[:, :, ::-1, ::-1]  # [Cout,Cin,KH,KW]
        w2d = jnp.transpose(w_conv, (2, 3, 1, 0)).reshape(kh * kw * cin, cout)
        w2d = w2d.astype(jnp.bfloat16)
        group = 1

    m, k0 = patches.shape                     # true row count (before padding)
    ccols = w2d.shape[1]                      # true matmul column count (no 128 pad)
    tile_m = _choose_tile_m(m, k0, ccols, tile_m_max)
    m_pad = _round_up(m, tile_m)
    num_tiles = m_pad // tile_m
    if m_pad != m:
        patches = jnp.pad(patches, ((0, m_pad - m), (0, 0)))

    vmem_cap = 32 * 1024 * 1024               # explicit: v5e scoped default is 16 MiB
    cparams = pltpu.CompilerParams(
        dimension_semantics=("parallel",), vmem_limit_bytes=vmem_cap)

    p_spec = pl.BlockSpec((tile_m, k0), lambda i: (i, 0))
    w_spec = pl.BlockSpec((k0, ccols), lambda i: (0, 0))

    # ---------------- pass 1: per-tile per-column BN partials ----------------- #
    bytes1 = patches.size * 2 + w2d.size * 2 + 2 * num_tiles * ccols * 4
    s1, s2 = pl.pallas_call(
        stats_kernel,
        out_shape=(jax.ShapeDtypeStruct((num_tiles, 1, ccols), jnp.float32),
                   jax.ShapeDtypeStruct((num_tiles, 1, ccols), jnp.float32)),
        grid=(num_tiles,),
        in_specs=[p_spec, w_spec],
        out_specs=(pl.BlockSpec((1, 1, ccols), lambda i: (i, 0, 0)),
                   pl.BlockSpec((1, 1, ccols), lambda i: (i, 0, 0))),
        compiler_params=cparams,
        cost_estimate=pl.CostEstimate(
            flops=2 * m_pad * k0 * ccols, transcendentals=0, bytes_accessed=bytes1),
    )(patches, w2d)

    # ---------- finalize BN stats (tiny per-channel vectors, in XLA) ---------- #
    col_s1 = jnp.sum(s1[:, 0, :], axis=0)                     # [ccols]
    col_s2 = jnp.sum(s2[:, 0, :], axis=0)
    ch_s1 = col_s1.reshape(cout, group).sum(axis=1)           # fold phase columns
    ch_s2 = col_s2.reshape(cout, group).sum(axis=1)
    count = m * group                                          # == N*OH*OW (pad rows are 0)
    mean = ch_s1 / count
    # TODO(synk): E[y^2]-E[y]^2 in f32 can cancel when |mean| >> std; switch to
    # per-tile Welford partials if that regime matters.
    var = jnp.maximum(ch_s2 / count - mean * mean, 0.0)
    scale_c = gamma.astype(jnp.float32) * jax.lax.rsqrt(var + eps)
    bias_c = beta.astype(jnp.float32) - mean * scale_c
    scale = jnp.repeat(scale_c, group).reshape(1, ccols)       # per-column (co-major)
    bias = jnp.repeat(bias_c, group).reshape(1, ccols)

    # ------------- pass 2: fused matmul + BN affine + ReLU (f32 out) ---------- #
    bytes2 = patches.size * 2 + w2d.size * 2 + m_pad * ccols * 4 + 2 * ccols * 4
    out_mat = pl.pallas_call(
        fused_matmul_bn_relu_kernel,
        out_shape=jax.ShapeDtypeStruct((m_pad, ccols), jnp.float32),
        grid=(num_tiles,),
        in_specs=[p_spec, w_spec,
                  pl.BlockSpec((1, ccols), lambda i: (0, 0)),
                  pl.BlockSpec((1, ccols), lambda i: (0, 0))],
        out_specs=pl.BlockSpec((tile_m, ccols), lambda i: (i, 0)),
        compiler_params=cparams,
        cost_estimate=pl.CostEstimate(
            flops=2 * m_pad * k0 * ccols + 2 * m_pad * ccols,
            transcendentals=0, bytes_accessed=bytes2),
    )(patches, w2d, scale, bias)

    if m_pad != m:
        out_mat = out_mat[:m]

    # TODO(synk): the NHWC(phase) -> NCHW rearrangement below is one XLA transpose
    # over the true-size output; a scatter-writing kernel could remove it if the
    # caller cannot accept channels-last.
    if fast:
        out = out_mat.reshape(n, h, w, cout, kh, kw)           # (n, ih, iw, co, dy, dx)
        out = jnp.transpose(out, (0, 3, 1, 4, 2, 5)).reshape(n, cout, oh, ow)
    else:
        out = out_mat.reshape(n, oh, ow, cout)
        out = jnp.transpose(out, (0, 3, 1, 2))
    return out


# ----------------------------------------------------------------------------- #
# Pure-JAX reference (lax conv with lhs_dilation + batch-stat BN + ReLU)
# ----------------------------------------------------------------------------- #
def _reference(x_nchw, weight_iohw, gamma, beta, *, stride, padding):
    cin, cout, kh, kw = weight_iohw.shape
    w_conv = jnp.transpose(weight_iohw, (1, 0, 2, 3))[:, :, ::-1, ::-1]
    y = jax.lax.conv_general_dilated(
        x_nchw.astype(jnp.float32), w_conv.astype(jnp.float32),
        window_strides=(1, 1),
        padding=[(kh - 1 - padding, kh - 1 - padding),
                 (kw - 1 - padding, kw - 1 - padding)],
        lhs_dilation=(stride, stride),
        dimension_numbers=("NCHW", "OIHW", "NCHW"))
    mean = jnp.mean(y, axis=(0, 2, 3), keepdims=True)
    var = jnp.mean((y - mean) ** 2, axis=(0, 2, 3), keepdims=True)
    y = (y - mean) * jax.lax.rsqrt(var + 1e-3)
    y = y * gamma.reshape(1, -1, 1, 1) + beta.reshape(1, -1, 1, 1)
    return jnp.maximum(y, 0.0)


if __name__ == "__main__":
    key = jax.random.PRNGKey(0)

    # --- config 1: BasicTransConv2d(4, 8, kernel_size=2, stride=2, padding=0) ---
    # k == s, p == 0 -> sub-pixel fast path (single matmul + depth-to-space).
    N, H, W = 2, 16, 16
    in_planes, out_planes, ksize, stride, padding = 4, 8, 2, 2, 0
    kx, kw_, kg, kb = jax.random.split(key, 4)
    x = jax.random.normal(kx, (N, in_planes, H, W), dtype=jnp.float32)
    weight = 0.1 * jax.random.normal(
        kw_, (in_planes, out_planes, ksize, ksize), dtype=jnp.float32)
    gamma = 1.0 + 0.1 * jax.random.normal(kg, (out_planes,), dtype=jnp.float32)
    beta = 0.1 * jax.random.normal(kb, (out_planes,), dtype=jnp.float32)

    fwd = jax.jit(functools.partial(basic_transconv2d, stride=stride, padding=padding))
    out = jax.block_until_ready(fwd(x, weight, gamma, beta))
    ref = jax.block_until_ready(
        _reference(x, weight, gamma, beta, stride=stride, padding=padding))
    OH = (H - 1) * stride - 2 * padding + ksize
    OW = (W - 1) * stride - 2 * padding + ksize
    assert out.shape == (N, out_planes, OH, OW)
    # bf16 matmul inputs (f32 accumulation, f32 BN stats) vs f32 reference.
    assert jnp.allclose(out, ref, rtol=3e-2, atol=3e-2), "fast-path mismatch vs reference"

    # --- config 2: kernel_size=3, stride=2, padding=1 (general im2col path) ---
    ksize2, stride2, padding2 = 3, 2, 1
    kx2, kw2 = jax.random.split(kb, 2)
    x2 = jax.random.normal(kx2, (N, in_planes, H, W), dtype=jnp.float32)
    weight2 = 0.1 * jax.random.normal(
        kw2, (in_planes, out_planes, ksize2, ksize2), dtype=jnp.float32)
    fwd2 = jax.jit(functools.partial(basic_transconv2d, stride=stride2, padding=padding2))
    out2 = jax.block_until_ready(fwd2(x2, weight2, gamma, beta))
    ref2 = jax.block_until_ready(
        _reference(x2, weight2, gamma, beta, stride=stride2, padding=padding2))
    OH2 = (H - 1) * stride2 - 2 * padding2 + ksize2
    assert out2.shape == (N, out_planes, OH2, OH2)
    assert jnp.allclose(out2, ref2, rtol=3e-2, atol=3e-2), "general-path mismatch vs reference"

    print("KERNEL_OK")
</pallas_src>

<mosaic_0001>
module attributes {stable_mosaic.version = 11 : i64} {
  func.func @stats_kernel(%arg0: i32, %arg1: memref<256x4xbf16, #tpu.memory_space<vmem>>, %arg2: memref<4x32xbf16, #tpu.memory_space<vmem>>, %arg3: memref<1x1x32xf32, #tpu.memory_space<vmem>>, %arg4: memref<1x1x32xf32, #tpu.memory_space<vmem>>) attributes {dimension_semantics = [#tpu.dimension_semantics<parallel>], iteration_bounds = array<i64: 2>, scalar_prefetch = 0 : i64, scratch_operands = 0 : i64, tpu.core_type = #tpu.core_type<tc>, window_params = [{transform_indices = @transform_0, window_bounds = array<i64: 256, 4>}, {pipeline_mode = #tpu.pipeline_mode<synchronous>, transform_indices = @transform_1, window_bounds = array<i64: 4, 32>}, {transform_indices = @transform_2, window_bounds = array<i64: 1, 1, 32>}, {transform_indices = @transform_3, window_bounds = array<i64: 1, 1, 32>}]} {
    %c0 = arith.constant 0 : index
    %c0_0 = arith.constant 0 : index
    %0 = vector.load %arg1[%c0, %c0_0] : memref<256x4xbf16, #tpu.memory_space<vmem>>, vector<256x4xbf16>
    %c0_1 = arith.constant 0 : index
    %c0_2 = arith.constant 0 : index
    %1 = vector.load %arg2[%c0_1, %c0_2] : memref<4x32xbf16, #tpu.memory_space<vmem>>, vector<4x32xbf16>
    %cst = arith.constant dense<0.000000e+00> : vector<256x32xf32>
    %2 = tpu.matmul %0, %1, %cst {dimension_numbers = #tpu.dot_dimension_numbers<[1], [0], [0], [1], [0, 0, 1, 1], [], []>} : vector<256x4xbf16>, vector<4x32xbf16>, vector<256x32xf32> -> vector<256x32xf32>
    %cst_3 = arith.constant dense<0.000000e+00> : vector<32xf32>
    %3 = vector.multi_reduction <add>, %2, %cst_3 [0] : vector<256x32xf32> to vector<32xf32>
    %4 = vector.shape_cast %3 : vector<32xf32> to vector<1x32xf32>
    %5 = vector.shape_cast %4 : vector<1x32xf32> to vector<1x1x32xf32>
    %c0_4 = arith.constant 0 : index
    %c0_5 = arith.constant 0 : index
    %c0_6 = arith.constant 0 : index
    %6 = vector.load %arg3[%c0_4, %c0_5, %c0_6] : memref<1x1x32xf32, #tpu.memory_space<vmem>>, vector<1x1x32xf32>
    tpu.vector_store %arg3[%c0_4, %c0_5, %c0_6], %5 {strides = array<i32>} : memref<1x1x32xf32, #tpu.memory_space<vmem>>, vector<1x1x32xf32>,
    %7 = arith.mulf %2, %2 : vector<256x32xf32>
    %cst_7 = arith.constant dense<0.000000e+00> : vector<32xf32>
    %8 = vector.multi_reduction <add>, %7, %cst_7 [0] : vector<256x32xf32> to vector<32xf32>
    %9 = vector.shape_cast %8 : vector<32xf32> to vector<1x32xf32>
    %10 = vector.shape_cast %9 : vector<1x32xf32> to vector<1x1x32xf32>
    %c0_8 = arith.constant 0 : index
    %c0_9 = arith.constant 0 : index
    %c0_10 = arith.constant 0 : index
    %11 = vector.load %arg4[%c0_8, %c0_9, %c0_10] : memref<1x1x32xf32, #tpu.memory_space<vmem>>, vector<1x1x32xf32>
    tpu.vector_store %arg4[%c0_8, %c0_9, %c0_10], %10 {strides = array<i32>} : memref<1x1x32xf32, #tpu.memory_space<vmem>>, vector<1x1x32xf32>,
    return
  }
  func.func @transform_0(%arg0: i32) -> (i32, i32) {
    %c0_i32 = arith.constant 0 : i32
    %c0_i32_0 = arith.constant 0 : i32
    return %arg0, %c0_i32 : i32, i32
  }
  func.func @transform_1(%arg0: i32) -> (i32, i32) {
    %c0_i32 = arith.constant 0 : i32
    %c0_i32_0 = arith.constant 0 : i32
    %c0_i32_1 = arith.constant 0 : i32
    return %c0_i32, %c0_i32_0 : i32, i32
  }
  func.func @transform_2(%arg0: i32) -> (i32, i32, i32) {
    %c0_i32 = arith.constant 0 : i32
    %c0_i32_0 = arith.constant 0 : i32
    %c0_i32_1 = arith.constant 0 : i32
    return %arg0, %c0_i32, %c0_i32_0 : i32, i32, i32
  }
  func.func @transform_3(%arg0: i32) -> (i32, i32, i32) {
    %c0_i32 = arith.constant 0 : i32
    %c0_i32_0 = arith.constant 0 : i32
    %c0_i32_1 = arith.constant 0 : i32
    return %arg0, %c0_i32, %c0_i32_0 : i32, i32, i32
  }
}

module attributes {stable_mosaic.version = 11 : i64} {
  func.func @fused_matmul_bn_relu_kernel(%arg0: i32, %arg1: memref<256x4xbf16, #tpu.memory_space<vmem>>, %arg2: memref<4x32xbf16, #tpu.memory_space<vmem>>, %arg3: memref<1x32xf32, #tpu.memory_space<vmem>>, %arg4: memref<1x32xf32, #tpu.memory_space<vmem>>, %arg5: memref<256x32xf32, #tpu.memory_space<vmem>>) attributes {dimension_semantics = [#tpu.dimension_semantics<parallel>], iteration_bounds = array<i64: 2>, scalar_prefetch = 0 : i64, scratch_operands = 0 : i64, tpu.core_type = #tpu.core_type<tc>, window_params = [{transform_indices = @transform_0, window_bounds = array<i64: 256, 4>}, {pipeline_mode = #tpu.pipeline_mode<synchronous>, transform_indices = @transform_1, window_bounds = array<i64: 4, 32>}, {pipeline_mode = #tpu.pipeline_mode<synchronous>, transform_indices = @transform_2, window_bounds = array<i64: 1, 32>}, {pipeline_mode = #tpu.pipeline_mode<synchronous>, transform_indices = @transform_3, window_bounds = array<i64: 1, 32>}, {transform_indices = @transform_4, window_bounds = array<i64: 256, 32>}]} {
    %c0 = arith.constant 0 : index
    %c0_0 = arith.constant 0 : index
    %0 = vector.load %arg1[%c0, %c0_0] : memref<256x4xbf16, #tpu.memory_space<vmem>>, vector<256x4xbf16>
    %c0_1 = arith.constant 0 : index
    %c0_2 = arith.constant 0 : index
    %1 = vector.load %arg2[%c0_1, %c0_2] : memref<4x32xbf16, #tpu.memory_space<vmem>>, vector<4x32xbf16>
    %cst = arith.constant dense<0.000000e+00> : vector<256x32xf32>
    %2 = tpu.matmul %0, %1, %cst {dimension_numbers = #tpu.dot_dimension_numbers<[1], [0], [0], [1], [0, 0, 1, 1], [], []>} : vector<256x4xbf16>, vector<4x32xbf16>, vector<256x32xf32> -> vector<256x32xf32>
    %c0_3 = arith.constant 0 : index
    %c0_4 = arith.constant 0 : index
    %3 = vector.load %arg3[%c0_3, %c0_4] : memref<1x32xf32, #tpu.memory_space<vmem>>, vector<1x32xf32>
    %4 = vector.broadcast %3 : vector<1x32xf32> to vector<256x32xf32>
    %5 = arith.mulf %2, %4 : vector<256x32xf32>
    %c0_5 = arith.constant 0 : index
    %c0_6 = arith.constant 0 : index
    %6 = vector.load %arg4[%c0_5, %c0_6] : memref<1x32xf32, #tpu.memory_space<vmem>>, vector<1x32xf32>
    %7 = vector.broadcast %6 : vector<1x32xf32> to vector<256x32xf32>
    %8 = arith.addf %5, %7 : vector<256x32xf32>
    %cst_7 = arith.constant 0.000000e+00 : f32
    %9 = vector.broadcast %cst_7 : f32 to vector<256x32xf32>
    %10 = arith.maximumf %8, %9 : vector<256x32xf32>
    %c0_8 = arith.constant 0 : index
    %c0_9 = arith.constant 0 : index
    %11 = vector.load %arg5[%c0_8, %c0_9] : memref<256x32xf32, #tpu.memory_space<vmem>>, vector<256x32xf32>
    tpu.vector_store %arg5[%c0_8, %c0_9], %10 {strides = array<i32>} : memref<256x32xf32, #tpu.memory_space<vmem>>, vector<256x32xf32>,
    return
  }
  func.func @transform_0(%arg0: i32) -> (i32, i32) {
    %c0_i32 = arith.constant 0 : i32
    %c0_i32_0 = arith.constant 0 : i32
    return %arg0, %c0_i32 : i32, i32
  }
  func.func @transform_1(%arg0: i32) -> (i32, i32) {
    %c0_i32 = arith.constant 0 : i32
    %c0_i32_0 = arith.constant 0 : i32
    %c0_i32_1 = arith.constant 0 : i32
    return %c0_i32, %c0_i32_0 : i32, i32
  }
  func.func @transform_2(%arg0: i32) -> (i32, i32) {
    %c0_i32 = arith.constant 0 : i32
    %c0_i32_0 = arith.constant 0 : i32
    %c0_i32_1 = arith.constant 0 : i32
    return %c0_i32, %c0_i32_0 : i32, i32
  }
  func.func @transform_3(%arg0: i32) -> (i32, i32) {
    %c0_i32 = arith.constant 0 : i32
    %c0_i32_0 = arith.constant 0 : i32
    %c0_i32_1 = arith.constant 0 : i32
    return %c0_i32, %c0_i32_0 : i32, i32
  }
  func.func @transform_4(%arg0: i32) -> (i32, i32) {
    %c0_i32 = arith.constant 0 : i32
    %c0_i32_0 = arith.constant 0 : i32
    return %arg0, %c0_i32 : i32, i32
  }
}

</mosaic_0001>

<llo_original>
// kernel: basic_transconv2d.2
$region0: #{basic_transconv2d.2}
  #allocation0 [shape = 'u32[]', space=smem, size = 0x4, offset = 0x4, fixed_abs, tag = 'smem constant byte address 0x4 - core index']
  #allocation1 [shape = 'u32[144,128]{1,0:T(1,128)}', space=vmem, size = 0x12000, scoped, tag = 'internal scratch']
  %s0 = inlined_call_operand.vmem [shape: bf16[512,4], index: 0, kind: input, shape index: {}]
  %s1 = inlined_call_operand.vmem [shape: bf16[4,32], index: 1, kind: input, shape index: {}]
  %s2 = inlined_call_operand.vmem [shape: f32[2,1,32], index: 2, kind: output, shape index: {0}]
  %s3 = inlined_call_operand.vmem [shape: f32[2,1,32], index: 3, kind: output, shape index: {1}]
  %4 = xla_tuple %s2, %s3
  %s5 = sld [smem:[#allocation0]]
  $region49: #{basic_transconv2d.2} parent=0
    _
  %s7 = ssub.s32 1, %s5
  %s8 = scalar_select 0, %s7, %s5
  loop: start=0, step=1, limit=4
  $region2: #{basic_transconv2d.2} parent=0 // loop_pre_header
    _
  $region3: #{basic_transconv2d.2} parent=0 // loop_header
    %s10 = sphi 0, %s14
    %p11 = scmp.ge.s32.totalorder %s10, 4
    %s20 = sphi 0, %s22
    %s23 = sphi 0, %s20
    %s24 = sphi 0, %s23
    %s40 = sphi 0, %s24
    %s44 = sphi 0, %s44
    %s46 = sphi 0, %s44
    %s47 = sphi 0, %s46
    %s61 = sphi 0, %s47
    %s67 = sphi 0, %s69
    %s70 = sphi 0, %s67
    %s71 = sphi 0, %s70
    %s87 = sphi 0, %s71
    %s93 = sphi 0, %s95
    %s96 = sphi 0, %s93
    %s97 = sphi 0, %s96
    %s113 = sphi 0, %s97
  $region4: #{basic_transconv2d.2} parent=0 // loop_header_branch
    %13 = sbr.rel (%p11) target = $region8
  $region5: #{basic_transconv2d.2} parent=0 // loop_body
    %s15 = ssub.s32 %s10, 1
    %s16 = ssub.s32 %s10, 2
    %s17 = sadd.s32 %s10, 1
    %s18 = ssub.s32 %s10, %s17
    %p19 = scmp.eq.s32.totalorder %s18, 0
    %s21 = sadd.s32 %s20, 1
    %s22 = scalar_select %p19, %s20, %s21
    %p25 = pneg %p19
    %p26 = scmp.eq.s32.totalorder %s10, 1
    %p27 = por %p25, %p26
    %p28 = scmp.ne.s32.totalorder %s20, %s23
    %p29 = scmp.eq.s32.totalorder %s10, 0
    %p30 = por %p28, %p29
    %p31 = scmp.ne.s32.totalorder %s20, %s23
    %p32 = scmp.eq.s32.totalorder %s15, 1
    %p33 = por %p31, %p32
    %p34 = scmp.ne.s32.totalorder %s23, %s24
    %p35 = scmp.eq.s32.totalorder %s15, 0
    %p36 = por %p34, %p35
    %p37 = scmp.ne.s32.totalorder %s23, %s24
    %p38 = scmp.eq.s32.totalorder %s16, 1
    %p39 = por %p37, %p38
    %p41 = scmp.ne.s32.totalorder %s24, %s40
    %p42 = scmp.eq.s32.totalorder %s16, 0
    %p43 = por %p41, %p42
    %s45 = sadd.s32 %s44, 1
    %p48 = scmp.eq.s32.totalorder %s10, 1
    %p49 = scmp.ne.s32.totalorder %s44, %s46
    %p50 = scmp.eq.s32.totalorder %s10, 0
    %p51 = por %p49, %p50
    %p52 = scmp.ne.s32.totalorder %s44, %s46
    %p53 = scmp.eq.s32.totalorder %s15, 1
    %p54 = por %p52, %p53
    %p55 = scmp.ne.s32.totalorder %s46, %s47
    %p56 = scmp.eq.s32.totalorder %s15, 0
    %p57 = por %p55, %p56
    %p58 = scmp.ne.s32.totalorder %s46, %s47
    %p59 = scmp.eq.s32.totalorder %s16, 1
    %p60 = por %p58, %p59
    %p62 = scmp.ne.s32.totalorder %s47, %s61
    %p63 = scmp.eq.s32.totalorder %s16, 0
    %p64 = por %p62, %p63
    %s65 = ssub.s32 %s10, %s17
    %p66 = scmp.eq.s32.totalorder %s65, 0
    %s68 = sadd.s32 %s67, 1
    %s69 = scalar_select %p66, %s67, %s68
    %p72 = pneg %p66
    %p73 = scmp.eq.s32.totalorder %s10, 1
    %p74 = por %p72, %p73
    %p75 = scmp.ne.s32.totalorder %s67, %s70
    %p76 = scmp.eq.s32.totalorder %s10, 0
    %p77 = por %p75, %p76
    %p78 = scmp.ne.s32.totalorder %s67, %s70
    %p79 = scmp.eq.s32.totalorder %s15, 1
    %p80 = por %p78, %p79
    %p81 = scmp.ne.s32.totalorder %s70, %s71
    %p82 = scmp.eq.s32.totalorder %s15, 0
    %p83 = por %p81, %p82
    %p84 = scmp.ne.s32.totalorder %s70, %s71
    %p85 = scmp.eq.s32.totalorder %s16, 1
    %p86 = por %p84, %p85
    %p88 = scmp.ne.s32.totalorder %s71, %s87
    %p89 = scmp.eq.s32.totalorder %s16, 0
    %p90 = por %p88, %p89
    %s91 = ssub.s32 %s10, %s17
    %p92 = scmp.eq.s32.totalorder %s91, 0
    %s94 = sadd.s32 %s93, 1
    %s95 = scalar_select %p92, %s93, %s94
    %p98 = pneg %p92
    %p99 = scmp.eq.s32.totalorder %s10, 1
    %p100 = por %p98, %p99
    %p101 = scmp.ne.s32.totalorder %s93, %s96
    %p102 = scmp.eq.s32.totalorder %s10, 0
    %p103 = por %p101, %p102
    %p104 = scmp.ne.s32.totalorder %s93, %s96
    %p105 = scmp.eq.s32.totalorder %s15, 1
    %p106 = por %p104, %p105
    %p107 = scmp.ne.s32.totalorder %s96, %s97
    %p108 = scmp.eq.s32.totalorder %s15, 0
    %p109 = por %p107, %p108
    %p110 = scmp.ne.s32.totalorder %s96, %s97
    %p111 = scmp.eq.s32.totalorder %s16, 1
    %p112 = por %p110, %p111
    %p114 = scmp.ne.s32.totalorder %s97, %s113
    %p115 = scmp.eq.s32.totalorder %s16, 0
    %p116 = por %p114, %p115
    %p117 = scmp.le.s32.totalorder 1, %s10
    %p118 = scmp.lt.s32.totalorder %s10, 3
    %p119 = pnand %p117, %p118
    %p120 = pneg %p119
    // Predicated region
    $region9: #{basic_transconv2d.2} parent=5 // pred_check
      _
    $region10: #{basic_transconv2d.2} parent=5 // pred_check_branch
      %122 = sbr.rel (%p119) target = $region12
    $region11: #{basic_transconv2d.2} parent=5 // pred_region
      %s123 = ssub.s32 %s10, 1
      // Predicated region
      $region13: #{basic_transconv2d.2} parent=11 // pred_check
        %p124 = pneg %p57
      $region14: #{basic_transconv2d.2} parent=11 // pred_check_branch
        %126 = sbr.rel (%p124) target = $region16
      $region15: #{basic_transconv2d.2} parent=11 // pred_region
        _
      $region16: #{basic_transconv2d.2} parent=11 // pred_fallthru
        _
    $region12: #{basic_transconv2d.2} parent=5 // pred_fallthru
      _
    %p127 = scmp.lt.s32.totalorder %s10, 2
    // Predicated region
    $region17: #{basic_transconv2d.2} parent=5 // pred_check
      %p128 = pneg %p127
    $region18: #{basic_transconv2d.2} parent=5 // pred_check_branch
      %130 = sbr.rel (%p128) target = $region20
    $region19: #{basic_transconv2d.2} parent=5 // pred_region
      // Predicated region
      $region21: #{basic_transconv2d.2} parent=19 // pred_check
        %p131 = pneg %p30
      $region22: #{basic_transconv2d.2} parent=19 // pred_check_branch
        %133 = sbr.rel (%p131) target = $region24
      $region23: #{basic_transconv2d.2} parent=19 // pred_region
        %s134 = smul.u32 32, %s10
        %p135 = scmp.lt.s32.totalorder %s134, 63
        %s136 = scalar_select %p135, %s134, 63
        %s137 = smul.addr %s136, 4
        %s138 = scalar_lea.vmem %s0, %s137
        %s139 = smul.u32 32, %s10
      $region24: #{basic_transconv2d.2} parent=19 // pred_fallthru
        _
    $region20: #{basic_transconv2d.2} parent=5 // pred_fallthru
      _
    %p140 = scmp.le.s32.totalorder 1, %s10
    %p141 = scmp.lt.s32.totalorder %s10, 3
    %p142 = pnand %p140, %p141
    %p143 = pneg %p142
    // Predicated region
    $region25: #{basic_transconv2d.2} parent=5 // pred_check
      _
    $region26: #{basic_transconv2d.2} parent=5 // pred_check_branch
      %145 = sbr.rel (%p142) target = $region28
    $region27: #{basic_transconv2d.2} parent=5 // pred_region
      %s146 = ssub.s32 %s10, 1
      %s147 = smul.u32 32, %s15
      %p148 = scmp.lt.s32.totalorder %s147, 63
      %s149 = scalar_select %p148, %s147, 63
      %s150 = smul.addr %s149, 4
      %s151 = scalar_lea.vmem %s0, %s150
      %p152 = pneg %p36
      %p153 = pneg %p33
      %p154 = pneg %p57
      %p155 = pneg %p54
      %p156 = pneg %p83
      %p157 = pneg %p80
      %p158 = scmp.lt.s32.totalorder %s15, 1
      %s159 = scalar_select %p158, %s15, 1
      %s160 = scalar_lea.vmem %s2, %s159
      %p161 = pneg %p109
      %p162 = pneg %p106
      %p163 = scmp.lt.s32.totalorder %s15, 1
      %s164 = scalar_select %p163, %s15, 1
      %s165 = scalar_lea.vmem %s3, %s164
      %s166 = smul.u32 32, %s15
      %p167 = scmp.lt.s32.totalorder %s166, 63
      %s168 = scalar_select %p167, %s166, 63
      %s169 = smul.addr %s168, 4
      %s170 = scalar_lea.vmem %s0, %s169
      %s171 = smul.u32 32, %s15
      %p172 = scmp.lt.s32.totalorder %s15, 1
      %s173 = scalar_select %p172, %s15, 1
      %s174 = scalar_lea.vmem %s2, %s173
      %p175 = scmp.lt.s32.totalorder %s15, 1
      %s176 = scalar_select %p175, %s15, 1
      %s177 = scalar_lea.vmem %s3, %s176
      %v179 = vld [vmem:[%s170] sm:$0xf]
      %v180 = vld [vmem:[%s170 + $0x4] sm:$0xf]
      %v181 = vld [vmem:[%s170 + $0x8] sm:$0xf]
      %v182 = vld [vmem:[%s170 + $0xc] sm:$0xf]
      %v183 = vld [vmem:[%s170 + $0x10] sm:$0xf]
      %v184 = vld [vmem:[%s170 + $0x14] sm:$0xf]
      %v185 = vld [vmem:[%s170 + $0x18] sm:$0xf]
      %v186 = vld [vmem:[%s170 + $0x1c] sm:$0xf]
      %v187 = vld [vmem:[%s170 + $0x20] sm:$0xf]
      %v188 = vld [vmem:[%s170 + $0x24] sm:$0xf]
      %v189 = vld [vmem:[%s170 + $0x28] sm:$0xf]
      %v190 = vld [vmem:[%s170 + $0x2c] sm:$0xf]
      %v191 = vld [vmem:[%s170 + $0x30] sm:$0xf]
      %v192 = vld [vmem:[%s170 + $0x34] sm:$0xf]
      %v193 = vld [vmem:[%s170 + $0x38] sm:$0xf]
      %v194 = vld [vmem:[%s170 + $0x3c] sm:$0xf]
      %v195 = vld [vmem:[%s170 + $0x40] sm:$0xf]
      %v196 = vld [vmem:[%s170 + $0x44] sm:$0xf]
      %v197 = vld [vmem:[%s170 + $0x48] sm:$0xf]
      %v198 = vld [vmem:[%s170 + $0x4c] sm:$0xf]
      %v199 = vld [vmem:[%s170 + $0x50] sm:$0xf]
      %v200 = vld [vmem:[%s170 + $0x54] sm:$0xf]
      %v201 = vld [vmem:[%s170 + $0x58] sm:$0xf]
      %v202 = vld [vmem:[%s170 + $0x5c] sm:$0xf]
      %v203 = vld [vmem:[%s170 + $0x60] sm:$0xf]
      %v204 = vld [vmem:[%s170 + $0x64] sm:$0xf]
      %v205 = vld [vmem:[%s170 + $0x68] sm:$0xf]
      %v206 = vld [vmem:[%s170 + $0x6c] sm:$0xf]
      %v207 = vld [vmem:[%s170 + $0x70] sm:$0xf]
      %v208 = vld [vmem:[%s170 + $0x74] sm:$0xf]
      %v209 = vld [vmem:[%s170 + $0x78] sm:$0xf]
      %v210 = vld [vmem:[%s170 + $0x7c] sm:$0xf]
      %v211 = vld [vmem:[%s1] sm:$0x3]
      %v244 = vunpack.c.l.b16 %v179
      %v245 = vunpack.c.l.b16 %v180
      %v246 = vunpack.c.l.b16 %v181
      %v247 = vunpack.c.l.b16 %v182
      %v248 = vunpack.c.l.b16 %v183
      %v249 = vunpack.c.l.b16 %v184
      %v250 = vunpack.c.l.b16 %v185
      %v251 = vunpack.c.l.b16 %v186
      %v252 = vunpack.c.l.b16 %v187
      %v253 = vunpack.c.l.b16 %v188
      %v254 = vunpack.c.l.b16 %v189
      %v255 = vunpack.c.l.b16 %v190
      %v256 = vunpack.c.l.b16 %v191
      %v257 = vunpack.c.l.b16 %v192
      %v258 = vunpack.c.l.b16 %v193
      %v259 = vunpack.c.l.b16 %v194
      %v260 = vunpack.c.l.b16 %v195
      %v261 = vunpack.c.l.b16 %v196
      %v262 = vunpack.c.l.b16 %v197
      %v263 = vunpack.c.l.b16 %v198
      %v264 = vunpack.c.l.b16 %v199
      %v265 = vunpack.c.l.b16 %v200
      %v266 = vunpack.c.l.b16 %v201
      %v267 = vunpack.c.l.b16 %v202
      %v268 = vunpack.c.l.b16 %v203
      %v269 = vunpack.c.l.b16 %v204
      %v270 = vunpack.c.l.b16 %v205
      %v271 = vunpack.c.l.b16 %v206
      %v272 = vunpack.c.l.b16 %v207
      %v273 = vunpack.c.l.b16 %v208
      %v274 = vunpack.c.l.b16 %v209
      %v275 = vunpack.c.l.b16 %v210
      %v276 = vpack.c.b16 %v245, %v244
      %v277 = vpack.c.b16 %v247, %v246
      %v278 = vpack.c.b16 %v249, %v248
      %v279 = vpack.c.b16 %v251, %v250
      %v280 = vpack.c.b16 %v253, %v252
      %v281 = vpack.c.b16 %v255, %v254
      %v282 = vpack.c.b16 %v257, %v256
      %v283 = vpack.c.b16 %v259, %v258
      %v284 = vpack.c.b16 %v261, %v260
      %v285 = vpack.c.b16 %v263, %v262
      %v286 = vpack.c.b16 %v265, %v264
      %v287 = vpack.c.b16 %v267, %v266
      %v288 = vpack.c.b16 %v269, %v268
      %v289 = vpack.c.b16 %v271, %v270
      %v290 = vpack.c.b16 %v273, %v272
      %v291 = vpack.c.b16 %v275, %v274
      %vm292 = vcmask 31744
      %v294 = vsel %vm292, %v276, 0
      %v297 = vsel %vm292, %v277, 0
      %v300 = vsel %vm292, %v278, 0
      %v303 = vsel %vm292, %v279, 0
      %v306 = vsel %vm292, %v280, 0
      %v309 = vsel %vm292, %v281, 0
      %v312 = vsel %vm292, %v282, 0
      %v315 = vsel %vm292, %v283, 0
      %v318 = vsel %vm292, %v284, 0
      %v321 = vsel %vm292, %v285, 0
      %v324 = vsel %vm292, %v286, 0
      %v327 = vsel %vm292, %v287, 0
      %v330 = vsel %vm292, %v288, 0
      %v333 = vsel %vm292, %v289, 0
      %v336 = vsel %vm292, %v290, 0
      %v339 = vsel %vm292, %v291, 0
      %vm341 = vcmask 1041408
      %v343 = vsel %vm341, %v211, 0
      %345 = vmatprep.subr.bf16.mxu0 0
      %346 = vmatpush1.bf16.msra.mxu0 %v343
      %347 = vmatprep.subr.bf16.mxu0 0
      %348 = vmatpush1.bf16.msra.mxu0 0
      %349 = vmatprep.subr.bf16.mxu0 0
      %350 = vmatpush1.bf16.msra.mxu0 0
      %351 = vmatprep.subr.bf16.mxu0 0
      %352 = vmatpush1.bf16.msra.mxu0 0
      %353 = vmatprep.subr.bf16.mxu0 0
      %354 = vmatpush1.bf16.msra.mxu0 0
      %355 = vmatprep.subr.bf16.mxu0 0
      %356 = vmatpush1.bf16.msra.mxu0 0
      %357 = vmatprep.subr.bf16.mxu0 0
      %358 = vmatpush1.bf16.msra.mxu0 0
      %359 = vmatprep.subr.bf16.mxu0 0
      %360 = vmatpush1.bf16.msra.mxu0 0
      %361 = vmatprep.subr.bf16.mxu0 0
      %362 = vmatpush1.bf16.msra.mxu0 0
      %363 = vmatprep.subr.bf16.mxu0 0
      %364 = vmatpush1.bf16.msra.mxu0 0
      %365 = vmatprep.subr.bf16.mxu0 0
      %366 = vmatpush1.bf16.msra.mxu0 0
      %367 = vmatprep.subr.bf16.mxu0 0
      %368 = vmatpush1.bf16.msra.mxu0 0
      %369 = vmatprep.subr.bf16.mxu0 0
      %370 = vmatpush1.bf16.msra.mxu0 0
      %371 = vmatprep.subr.bf16.mxu0 0
      %372 = vmatpush1.bf16.msra.mxu0 0
      %373 = vmatprep.subr.bf16.mxu0 0
      %374 = vmatpush1.bf16.msra.mxu0 0
      %375 = vmatprep.subr.bf16.mxu0 0
      %376 = vmatpush1.bf16.msra.mxu0 0
      %377 = vmatprep.mubr.bf16.mxu0 0
      %378 = vmatmul.mubr.bf16.gmra.mrb[0].mxu0 %v294
      %v379 = vpop.f32.mrb[0].mxu0
      %v380 = vadd.f32 0.0, %v379
      %v381 = vpop.f32.mrb[0].mxu0
      %v382 = vpop.f32.mrb[0].mxu0
      %v383 = vadd.f32 0.0, %v382
      %v384 = vpop.f32.mrb[0].mxu0
      %385 = vmatprep.mubr.bf16.mxu0 0
      %386 = vmatmul.mubr.bf16.gmra.mrb[0].mxu0 %v297
      %v387 = vpop.f32.mrb[0].mxu0
      %v388 = vadd.f32 0.0, %v387
      %v389 = vpop.f32.mrb[0].mxu0
      %v390 = vpop.f32.mrb[0].mxu0
      %v391 = vadd.f32 0.0, %v390
      %v392 = vpop.f32.mrb[0].mxu0
      %393 = vmatprep.mubr.bf16.mxu0 0
      %394 = vmatmul.mubr.bf16.gmra.mrb[0].mxu0 %v300
      %v395 = vpop.f32.mrb[0].mxu0
      %v396 = vadd.f32 0.0, %v395
      %v397 = vpop.f32.mrb[0].mxu0
      %v398 = vpop.f32.mrb[0].mxu0
      %v399 = vadd.f32 0.0, %v398
      %v400 = vpop.f32.mrb[0].mxu0
      %401 = vmatprep.mubr.bf16.mxu0 0
      %402 = vmatmul.mubr.bf16.gmra.mrb[0].mxu0 %v303
      %v403 = vpop.f32.mrb[0].mxu0
      %v404 = vadd.f32 0.0, %v403
      %v405 = vpop.f32.mrb[0].mxu0
      %v406 = vpop.f32.mrb[0].mxu0
      %v407 = vadd.f32 0.0, %v406
      %v408 = vpop.f32.mrb[0].mxu0
      %409 = vmatprep.mubr.bf16.mxu0 0
      %410 = vmatmul.mubr.bf16.gmra.mrb[0].mxu0 %v306
      %v411 = vpop.f32.mrb[0].mxu0
      %v412 = vadd.f32 0.0, %v411
      %v413 = vpop.f32.mrb[0].mxu0
      %v414 = vpop.f32.mrb[0].mxu0
      %v415 = vadd.f32 0.0, %v414
      %v416 = vpop.f32.mrb[0].mxu0
      %417 = vmatprep.mubr.bf16.mxu0 0
      %418 = vmatmul.mubr.bf16.gmra.mrb[0].mxu0 %v309
      %v419 = vpop.f32.mrb[0].mxu0
      %v420 = vadd.f32 0.0, %v419
      %v421 = vpop.f32.mrb[0].mxu0
      %v422 = vpop.f32.mrb[0].mxu0
      %v423 = vadd.f32 0.0, %v422
      %v424 = vpop.f32.mrb[0].mxu0
      %425 = vmatprep.mubr.bf16.mxu0 0
      %426 = vmatmul.mubr.bf16.gmra.mrb[0].mxu0 %v312
      %v427 = vpop.f32.mrb[0].mxu0
      %v428 = vadd.f32 0.0, %v427
      %v429 = vpop.f32.mrb[0].mxu0
      %v430 = vpop.f32.mrb[0].mxu0
      %v431 = vadd.f32 0.0, %v430
      %v432 = vpop.f32.mrb[0].mxu0
      %433 = vmatprep.mubr.bf16.mxu0 0
      %434 = vmatmul.mubr.bf16.gmra.mrb[0].mxu0 %v315
      %v435 = vpop.f32.mrb[0].mxu0
      %v436 = vadd.f32 0.0, %v435
      %v437 = vpop.f32.mrb[0].mxu0
      %v438 = vpop.f32.mrb[0].mxu0
      %v439 = vadd.f32 0.0, %v438
      %v440 = vpop.f32.mrb[0].mxu0
      %441 = vmatprep.mubr.bf16.mxu0 0
      %442 = vmatmul.mubr.bf16.gmra.mrb[0].mxu0 %v318
      %v443 = vpop.f32.mrb[0].mxu0
      %v444 = vadd.f32 0.0, %v443
      %v445 = vpop.f32.mrb[0].mxu0
      %v446 = vpop.f32.mrb[0].mxu0
      %v447 = vadd.f32 0.0, %v446
      %v448 = vpop.f32.mrb[0].mxu0
      %449 = vmatprep.mubr.bf16.mxu0 0
      %450 = vmatmul.mubr.bf16.gmra.mrb[0].mxu0 %v321
      %v451 = vpop.f32.mrb[0].mxu0
      %v452 = vadd.f32 0.0, %v451
      %v453 = vpop.f32.mrb[0].mxu0
      %v454 = vpop.f32.mrb[0].mxu0
      %v455 = vadd.f32 0.0, %v454
      %v456 = vpop.f32.mrb[0].mxu0
      %457 = vmatprep.mubr.bf16.mxu0 0
      %458 = vmatmul.mubr.bf16.gmra.mrb[0].mxu0 %v324
      %v459 = vpop.f32.mrb[0].mxu0
      %v460 = vadd.f32 0.0, %v459
      %v461 = vpop.f32.mrb[0].mxu0
      %v462 = vpop.f32.mrb[0].mxu0
      %v463 = vadd.f32 0.0, %v462
      %v464 = vpop.f32.mrb[0].mxu0
      %465 = vmatprep.mubr.bf16.mxu0 0
      %466 = vmatmul.mubr.bf16.gmra.mrb[0].mxu0 %v327
      %v467 = vpop.f32.mrb[0].mxu0
      %v468 = vadd.f32 0.0, %v467
      %v469 = vpop.f32.mrb[0].mxu0
      %v470 = vpop.f32.mrb[0].mxu0
      %v471 = vadd.f32 0.0, %v470
      %v472 = vpop.f32.mrb[0].mxu0
      %473 = vmatprep.mubr.bf16.mxu0 0
      %474 = vmatmul.mubr.bf16.gmra.mrb[0].mxu0 %v330
      %v475 = vpop.f32.mrb[0].mxu0
      %v476 = vadd.f32 0.0, %v475
      %v477 = vpop.f32.mrb[0].mxu0
      %v478 = vpop.f32.mrb[0].mxu0
      %v479 = vadd.f32 0.0, %v478
      %v480 = vpop.f32.mrb[0].mxu0
      %481 = vmatprep.mubr.bf16.mxu0 0
      %482 = vmatmul.mubr.bf16.gmra.mrb[0].mxu0 %v333
      %v483 = vpop.f32.mrb[0].mxu0
      %v484 = vadd.f32 0.0, %v483
      %v485 = vpop.f32.mrb[0].mxu0
      %v486 = vpop.f32.mrb[0].mxu0
      %v487 = vadd.f32 0.0, %v486
      %v488 = vpop.f32.mrb[0].mxu0
      %489 = vmatprep.mubr.bf16.mxu0 0
      %490 = vmatmul.mubr.bf16.gmra.mrb[0].mxu0 %v336
      %v491 = vpop.f32.mrb[0].mxu0
      %v492 = vadd.f32 0.0, %v491
      %v493 = vpop.f32.mrb[0].mxu0
      %v494 = vpop.f32.mrb[0].mxu0
      %v495 = vadd.f32 0.0, %v494
      %v496 = vpop.f32.mrb[0].mxu0
      %497 = vmatprep.mubr.bf16.mxu0 0
      %498 = vmatmul.mubr.bf16.gmra.mrb[0].mxu0 %v339
      %v499 = vpop.f32.mrb[0].mxu0
      %v500 = vadd.f32 0.0, %v499
      %v501 = vpop.f32.mrb[0].mxu0
      %v502 = vpop.f32.mrb[0].mxu0
      %v503 = vadd.f32 0.0, %v502
      %v504 = vpop.f32.mrb[0].mxu0
      %505 = vdwg.mxu0
      %vm506 = vcmask 261120
      %v507 = vsel %vm506, %v380, 0.0
      %v508 = vsel %vm506, %v383, 0.0
      %v509 = vadd.f32 %v507, %v508
      %v510 = vsel %vm506, %v388, 0.0
      %v511 = vadd.f32 %v509, %v510
      %v512 = vsel %vm506, %v391, 0.0
      %v513 = vadd.f32 %v511, %v512
      %v514 = vsel %vm506, %v396, 0.0
      %v515 = vadd.f32 %v513, %v514
      %v516 = vsel %vm506, %v399, 0.0
      %v517 = vadd.f32 %v515, %v516
      %v518 = vsel %vm506, %v404, 0.0
      %v519 = vadd.f32 %v517, %v518
      %v520 = vsel %vm506, %v407, 0.0
      %v521 = vadd.f32 %v519, %v520
      %v522 = vsel %vm506, %v412, 0.0
      %v523 = vadd.f32 %v521, %v522
      %v524 = vsel %vm506, %v415, 0.0
      %v525 = vadd.f32 %v523, %v524
      %v526 = vsel %vm506, %v420, 0.0
      %v527 = vadd.f32 %v525, %v526
      %v528 = vsel %vm506, %v423, 0.0
      %v529 = vadd.f32 %v527, %v528
      %v530 = vsel %vm506, %v428, 0.0
      %v531 = vadd.f32 %v529, %v530
      %v532 = vsel %vm506, %v431, 0.0
      %v533 = vadd.f32 %v531, %v532
      %v534 = vsel %vm506, %v436, 0.0
      %v535 = vadd.f32 %v533, %v534
      %v536 = vsel %vm506, %v439, 0.0
      %v537 = vadd.f32 %v535, %v536
      %v538 = vsel %vm506, %v444, 0.0
      %v539 = vadd.f32 %v537, %v538
      %v540 = vsel %vm506, %v447, 0.0
      %v541 = vadd.f32 %v539, %v540
      %v542 = vsel %vm506, %v452, 0.0
      %v543 = vadd.f32 %v541, %v542
      %v544 = vsel %vm506, %v455, 0.0
      %v545 = vadd.f32 %v543, %v544
      %v546 = vsel %vm506, %v460, 0.0
      %v547 = vadd.f32 %v545, %v546
      %v548 = vsel %vm506, %v463, 0.0
      %v549 = vadd.f32 %v547, %v548
      %v550 = vsel %vm506, %v468, 0.0
      %v551 = vadd.f32 %v549, %v550
      %v552 = vsel %vm506, %v471, 0.0
      %v553 = vadd.f32 %v551, %v552
      %v554 = vsel %vm506, %v476, 0.0
      %v555 = vadd.f32 %v553, %v554
      %v556 = vsel %vm506, %v479, 0.0
      %v557 = vadd.f32 %v555, %v556
      %v558 = vsel %vm506, %v484, 0.0
      %v559 = vadd.f32 %v557, %v558
      %v560 = vsel %vm506, %v487, 0.0
      %v561 = vadd.f32 %v559, %v560
      %v562 = vsel %vm506, %v492, 0.0
      %v563 = vadd.f32 %v561, %v562
      %v564 = vsel %vm506, %v495, 0.0
      %v565 = vadd.f32 %v563, %v564
      %v566 = vsel %vm506, %v500, 0.0
      %v567 = vadd.f32 %v565, %v566
      %v568 = vsel %vm506, %v503, 0.0
      %v569 = vadd.f32 %v567, %v568
      %v570 = vrot.slane %v569, 4
      %v571 = vadd.f32 %v569, %v570
      %v572 = vrot.slane %v571, 2
      %v573 = vadd.f32 %v571, %v572
      %v574 = vrot.slane %v573, 1
      %v575 = vadd.f32 %v573, %v574
      %vm576 = vcmask 253952
      %577 = vst.msk [vmem:[%s174] sm:$0x1] %vm576, %v575
      %v578 = vmul.f32 %v380, %v380
      %v579 = vmul.f32 %v383, %v383
      %v580 = vmul.f32 %v388, %v388
      %v581 = vmul.f32 %v391, %v391
      %v582 = vmul.f32 %v396, %v396
      %v583 = vmul.f32 %v399, %v399
      %v584 = vmul.f32 %v404, %v404
      %v585 = vmul.f32 %v407, %v407
      %v586 = vmul.f32 %v412, %v412
      %v587 = vmul.f32 %v415, %v415
      %v588 = vmul.f32 %v420, %v420
      %v589 = vmul.f32 %v423, %v423
      %v590 = vmul.f32 %v428, %v428
      %v591 = vmul.f32 %v431, %v431
      %v592 = vmul.f32 %v436, %v436
      %v593 = vmul.f32 %v439, %v439
      %v594 = vmul.f32 %v444, %v444
      %v595 = vmul.f32 %v447, %v447
      %v596 = vmul.f32 %v452, %v452
      %v597 = vmul.f32 %v455, %v455
      %v598 = vmul.f32 %v460, %v460
      %v599 = vmul.f32 %v463, %v463
      %v600 = vmul.f32 %v468, %v468
      %v601 = vmul.f32 %v471, %v471
      %v602 = vmul.f32 %v476, %v476
      %v603 = vmul.f32 %v479, %v479
      %v604 = vmul.f32 %v484, %v484
      %v605 = vmul.f32 %v487, %v487
      %v606 = vmul.f32 %v492, %v492
      %v607 = vmul.f32 %v495, %v495
      %v608 = vmul.f32 %v500, %v500
      %v609 = vmul.f32 %v503, %v503
      %v610 = vsel %vm506, %v578, 0.0
      %v611 = vsel %vm506, %v579, 0.0
      %v612 = vadd.f32 %v610, %v611
      %v613 = vsel %vm506, %v580, 0.0
      %v614 = vadd.f32 %v612, %v613
      %v615 = vsel %vm506, %v581, 0.0
      %v616 = vadd.f32 %v614, %v615
      %v617 = vsel %vm506, %v582, 0.0
      %v618 = vadd.f32 %v616, %v617
      %v619 = vsel %vm506, %v583, 0.0
      %v620 = vadd.f32 %v618, %v619
      %v621 = vsel %vm506, %v584, 0.0
      %v622 = vadd.f32 %v620, %v621
      %v623 = vsel %vm506, %v585, 0.0
      %v624 = vadd.f32 %v622, %v623
      %v625 = vsel %vm506, %v586, 0.0
      %v626 = vadd.f32 %v624, %v625
      %v627 = vsel %vm506, %v587, 0.0
      %v628 = vadd.f32 %v626, %v627
      %v629 = vsel %vm506, %v588, 0.0
      %v630 = vadd.f32 %v628, %v629
      %v631 = vsel %vm506, %v589, 0.0
      %v632 = vadd.f32 %v630, %v631
      %v633 = vsel %vm506, %v590, 0.0
      %v634 = vadd.f32 %v632, %v633
      %v635 = vsel %vm506, %v591, 0.0
      %v636 = vadd.f32 %v634, %v635
      %v637 = vsel %vm506, %v592, 0.0
      %v638 = vadd.f32 %v636, %v637
      %v639 = vsel %vm506, %v593, 0.0
      %v640 = vadd.f32 %v638, %v639
      %v641 = vsel %vm506, %v594, 0.0
      %v642 = vadd.f32 %v640, %v641
      %v643 = vsel %vm506, %v595, 0.0
      %v644 = vadd.f32 %v642, %v643
      %v645 = vsel %vm506, %v596, 0.0
      %v646 = vadd.f32 %v644, %v645
      %v647 = vsel %vm506, %v597, 0.0
      %v648 = vadd.f32 %v646, %v647
      %v649 = vsel %vm506, %v598, 0.0
      %v650 = vadd.f32 %v648, %v649
      %v651 = vsel %vm506, %v599, 0.0
      %v652 = vadd.f32 %v650, %v651
      %v653 = vsel %vm506, %v600, 0.0
      %v654 = vadd.f32 %v652, %v653
      %v655 = vsel %vm506, %v601, 0.0
      %v656 = vadd.f32 %v654, %v655
      %v657 = vsel %vm506, %v602, 0.0
      %v658 = vadd.f32 %v656, %v657
      %v659 = vsel %vm506, %v603, 0.0
      %v660 = vadd.f32 %v658, %v659
      %v661 = vsel %vm506, %v604, 0.0
      %v662 = vadd.f32 %v660, %v661
      %v663 = vsel %vm506, %v605, 0.0
      %v664 = vadd.f32 %v662, %v663
      %v665 = vsel %vm506, %v606, 0.0
      %v666 = vadd.f32 %v664, %v665
      %v667 = vsel %vm506, %v607, 0.0
      %v668 = vadd.f32 %v666, %v667
      %v669 = vsel %vm506, %v608, 0.0
      %v670 = vadd.f32 %v668, %v669
      %v671 = vsel %vm506, %v609, 0.0
      %v672 = vadd.f32 %v670, %v671
      %v673 = vrot.slane %v672, 4
      %v674 = vadd.f32 %v672, %v673
      %v675 = vrot.slane %v674, 2
      %v676 = vadd.f32 %v674, %v675
      %v677 = vrot.slane %v676, 1
      %v678 = vadd.f32 %v676, %v677
      %679 = vst.msk [vmem:[%s177] sm:$0x1] %vm576, %v678
      %p680 = scmp.lt.s32.totalorder %s15, 1
      %s681 = scalar_select %p680, %s15, 1
      %s682 = scalar_lea.vmem %s2, %s681
      %p683 = scmp.lt.s32.totalorder %s15, 1
      %s684 = scalar_select %p683, %s15, 1
      %s685 = scalar_lea.vmem %s3, %s684
      // Predicated region
      $region29: #{basic_transconv2d.2} parent=27 // pred_check
        %p686 = pneg %p80
      $region30: #{basic_transconv2d.2} parent=27 // pred_check_branch
        %688 = sbr.rel (%p686) target = $region32
      $region31: #{basic_transconv2d.2} parent=27 // pred_region
        _
      $region32: #{basic_transconv2d.2} parent=27 // pred_fallthru
        _
      // Predicated region
      $region33: #{basic_transconv2d.2} parent=27 // pred_check
        %p689 = pneg %p106
      $region34: #{basic_transconv2d.2} parent=27 // pred_check_branch
        %691 = sbr.rel (%p689) target = $region36
      $region35: #{basic_transconv2d.2} parent=27 // pred_region
        _
      $region36: #{basic_transconv2d.2} parent=27 // pred_fallthru
        _
    $region28: #{basic_transconv2d.2} parent=5 // pred_fallthru
      _
    %p692 = scmp.le.s32.totalorder 2, %s10
    // Predicated region
    $region37: #{basic_transconv2d.2} parent=5 // pred_check
      %p693 = pneg %p692
    $region38: #{basic_transconv2d.2} parent=5 // pred_check_branch
      %695 = sbr.rel (%p693) target = $region40
    $region39: #{basic_transconv2d.2} parent=5 // pred_region
      %s696 = ssub.s32 %s10, 2
      // Predicated region
      $region41: #{basic_transconv2d.2} parent=39 // pred_check
        %p697 = pneg %p86
      $region42: #{basic_transconv2d.2} parent=39 // pred_check_branch
        %699 = sbr.rel (%p697) target = $region44
      $region43: #{basic_transconv2d.2} parent=39 // pred_region
        %p700 = scmp.lt.s32.totalorder %s16, 1
        %s701 = scalar_select %p700, %s16, 1
        %s702 = scalar_lea.vmem %s2, %s701
      $region44: #{basic_transconv2d.2} parent=39 // pred_fallthru
        _
      // Predicated region
      $region45: #{basic_transconv2d.2} parent=39 // pred_check
        %p703 = pneg %p112
      $region46: #{basic_transconv2d.2} parent=39 // pred_check_branch
        %705 = sbr.rel (%p703) target = $region48
      $region47: #{basic_transconv2d.2} parent=39 // pred_region
        %p706 = scmp.lt.s32.totalorder %s16, 1
        %s707 = scalar_select %p706, %s16, 1
        %s708 = scalar_lea.vmem %s3, %s707
      $region48: #{basic_transconv2d.2} parent=39 // pred_fallthru
        _
    $region40: #{basic_transconv2d.2} parent=5 // pred_fallthru
      _
  $region6: #{basic_transconv2d.2} parent=0 // loop_footer
    %s14 = sadd.s32 1, %s10
  $region7: #{basic_transconv2d.2} parent=0 // loop_footer_branch
    %9 = sbr.rel target = $region3
  $region8: #{basic_transconv2d.2} parent=0 // loop_exit
    _

// kernel: basic_transconv2d.3
$region0: #{basic_transconv2d.3}
  #allocation0 [shape = 'u32[]', space=smem, size = 0x4, offset = 0x4, fixed_abs, tag = 'smem constant byte address 0x4 - core index']
  #allocation1 [shape = 'u32[144,128]{1,0:T(1,128)}', space=vmem, size = 0x12000, scoped, tag = 'internal scratch']
  %s0 = inlined_call_operand.vmem [shape: bf16[512,4], index: 0, kind: input, shape index: {}]
  %s1 = inlined_call_operand.vmem [shape: bf16[4,32], index: 1, kind: input, shape index: {}]
  %s2 = inlined_call_operand.vmem [shape: f32[1,32], index: 2, kind: input, shape index: {}]
  %s3 = inlined_call_operand.vmem [shape: f32[1,32], index: 3, kind: input, shape index: {}]
  %s4 = inlined_call_operand.vmem [shape: f32[512,32], index: 4, kind: output, shape index: {}]
  %s5 = sld [smem:[#allocation0]]
  $region49: #{basic_transconv2d.3} parent=0
    _
  %s7 = ssub.s32 1, %s5
  %s8 = scalar_select 0, %s7, %s5
  loop: start=0, step=1, limit=4
  $region2: #{basic_transconv2d.3} parent=0 // loop_pre_header
    _
  $region3: #{basic_transconv2d.3} parent=0 // loop_header
    %s10 = sphi 0, %s14
    %p11 = scmp.ge.s32.totalorder %s10, 4
    %s20 = sphi 0, %s22
    %s23 = sphi 0, %s20
    %s24 = sphi 0, %s23
    %s40 = sphi 0, %s24
    %s44 = sphi 0, %s44
    %s46 = sphi 0, %s44
    %s47 = sphi 0, %s46
    %s61 = sphi 0, %s47
    %s65 = sphi 0, %s65
    %s67 = sphi 0, %s65
    %s68 = sphi 0, %s67
    %s82 = sphi 0, %s68
    %s86 = sphi 0, %s86
    %s88 = sphi 0, %s86
    %s89 = sphi 0, %s88
    %s103 = sphi 0, %s89
    %s109 = sphi 0, %s111
    %s112 = sphi 0, %s109
    %s113 = sphi 0, %s112
    %s129 = sphi 0, %s113
  $region4: #{basic_transconv2d.3} parent=0 // loop_header_branch
    %13 = sbr.rel (%p11) target = $region8
  $region5: #{basic_transconv2d.3} parent=0 // loop_body
    %s15 = ssub.s32 %s10, 1
    %s16 = ssub.s32 %s10, 2
    %s17 = sadd.s32 %s10, 1
    %s18 = ssub.s32 %s10, %s17
    %p19 = scmp.eq.s32.totalorder %s18, 0
    %s21 = sadd.s32 %s20, 1
    %s22 = scalar_select %p19, %s20, %s21
    %p25 = pneg %p19
    %p26 = scmp.eq.s32.totalorder %s10, 1
    %p27 = por %p25, %p26
    %p28 = scmp.ne.s32.totalorder %s20, %s23
    %p29 = scmp.eq.s32.totalorder %s10, 0
    %p30 = por %p28, %p29
    %p31 = scmp.ne.s32.totalorder %s20, %s23
    %p32 = scmp.eq.s32.totalorder %s15, 1
    %p33 = por %p31, %p32
    %p34 = scmp.ne.s32.totalorder %s23, %s24
    %p35 = scmp.eq.s32.totalorder %s15, 0
    %p36 = por %p34, %p35
    %p37 = scmp.ne.s32.totalorder %s23, %s24
    %p38 = scmp.eq.s32.totalorder %s16, 1
    %p39 = por %p37, %p38
    %p41 = scmp.ne.s32.totalorder %s24, %s40
    %p42 = scmp.eq.s32.totalorder %s16, 0
    %p43 = por %p41, %p42
    %s45 = sadd.s32 %s44, 1
    %p48 = scmp.eq.s32.totalorder %s10, 1
    %p49 = scmp.ne.s32.totalorder %s44, %s46
    %p50 = scmp.eq.s32.totalorder %s10, 0
    %p51 = por %p49, %p50
    %p52 = scmp.ne.s32.totalorder %s44, %s46
    %p53 = scmp.eq.s32.totalorder %s15, 1
    %p54 = por %p52, %p53
    %p55 = scmp.ne.s32.totalorder %s46, %s47
    %p56 = scmp.eq.s32.totalorder %s15, 0
    %p57 = por %p55, %p56
    %p58 = scmp.ne.s32.totalorder %s46, %s47
    %p59 = scmp.eq.s32.totalorder %s16, 1
    %p60 = por %p58, %p59
    %p62 = scmp.ne.s32.totalorder %s47, %s61
    %p63 = scmp.eq.s32.totalorder %s16, 0
    %p64 = por %p62, %p63
    %s66 = sadd.s32 %s65, 1
    %p69 = scmp.eq.s32.totalorder %s10, 1
    %p70 = scmp.ne.s32.totalorder %s65, %s67
    %p71 = scmp.eq.s32.totalorder %s10, 0
    %p72 = por %p70, %p71
    %p73 = scmp.ne.s32.totalorder %s65, %s67
    %p74 = scmp.eq.s32.totalorder %s15, 1
    %p75 = por %p73, %p74
    %p76 = scmp.ne.s32.totalorder %s67, %s68
    %p77 = scmp.eq.s32.totalorder %s15, 0
    %p78 = por %p76, %p77
    %p79 = scmp.ne.s32.totalorder %s67, %s68
    %p80 = scmp.eq.s32.totalorder %s16, 1
    %p81 = por %p79, %p80
    %p83 = scmp.ne.s32.totalorder %s68, %s82
    %p84 = scmp.eq.s32.totalorder %s16, 0
    %p85 = por %p83, %p84
    %s87 = sadd.s32 %s86, 1
    %p90 = scmp.eq.s32.totalorder %s10, 1
    %p91 = scmp.ne.s32.totalorder %s86, %s88
    %p92 = scmp.eq.s32.totalorder %s10, 0
    %p93 = por %p91, %p92
    %p94 = scmp.ne.s32.totalorder %s86, %s88
    %p95 = scmp.eq.s32.totalorder %s15, 1
    %p96 = por %p94, %p95
    %p97 = scmp.ne.s32.totalorder %s88, %s89
    %p98 = scmp.eq.s32.totalorder %s15, 0
    %p99 = por %p97, %p98
    %p100 = scmp.ne.s32.totalorder %s88, %s89
    %p101 = scmp.eq.s32.totalorder %s16, 1
    %p102 = por %p100, %p101
    %p104 = scmp.ne.s32.totalorder %s89, %s103
    %p105 = scmp.eq.s32.totalorder %s16, 0
    %p106 = por %p104, %p105
    %s107 = ssub.s32 %s10, %s17
    %p108 = scmp.eq.s32.totalorder %s107, 0
    %s110 = sadd.s32 %s109, 1
    %s111 = scalar_select %p108, %s109, %s110
    %p114 = pneg %p108
    %p115 = scmp.eq.s32.totalorder %s10, 1
    %p116 = por %p114, %p115
    %p117 = scmp.ne.s32.totalorder %s109, %s112
    %p118 = scmp.eq.s32.totalorder %s10, 0
    %p119 = por %p117, %p118
    %p120 = scmp.ne.s32.totalorder %s109, %s112
    %p121 = scmp.eq.s32.totalorder %s15, 1
    %p122 = por %p120, %p121
    %p123 = scmp.ne.s32.totalorder %s112, %s113
    %p124 = scmp.eq.s32.totalorder %s15, 0
    %p125 = por %p123, %p124
    %p126 = scmp.ne.s32.totalorder %s112, %s113
    %p127 = scmp.eq.s32.totalorder %s16, 1
    %p128 = por %p126, %p127
    %p130 = scmp.ne.s32.totalorder %s113, %s129
    %p131 = scmp.eq.s32.totalorder %s16, 0
    %p132 = por %p130, %p131
    %p133 = scmp.le.s32.totalorder 1, %s10
    %p134 = scmp.lt.s32.totalorder %s10, 3
    %p135 = pnand %p133, %p134
    %p136 = pneg %p135
    // Predicated region
    $region9: #{basic_transconv2d.3} parent=5 // pred_check
      _
    $region10: #{basic_transconv2d.3} parent=5 // pred_check_branch
      %138 = sbr.rel (%p135) target = $region12
    $region11: #{basic_transconv2d.3} parent=5 // pred_region
      %s139 = ssub.s32 %s10, 1
      // Predicated region
      $region13: #{basic_transconv2d.3} parent=11 // pred_check
        %p140 = pneg %p57
      $region14: #{basic_transconv2d.3} parent=11 // pred_check_branch
        %142 = sbr.rel (%p140) target = $region16
      $region15: #{basic_transconv2d.3} parent=11 // pred_region
        _
      $region16: #{basic_transconv2d.3} parent=11 // pred_fallthru
        _
      // Predicated region
      $region17: #{basic_transconv2d.3} parent=11 // pred_check
        %p143 = pneg %p78
      $region18: #{basic_transconv2d.3} parent=11 // pred_check_branch
        %145 = sbr.rel (%p143) target = $region20
      $region19: #{basic_transconv2d.3} parent=11 // pred_region
        _
      $region20: #{basic_transconv2d.3} parent=11 // pred_fallthru
        _
      // Predicated region
      $region21: #{basic_transconv2d.3} parent=11 // pred_check
        %p146 = pneg %p99
      $region22: #{basic_transconv2d.3} parent=11 // pred_check_branch
        %148 = sbr.rel (%p146) target = $region24
      $region23: #{basic_transconv2d.3} parent=11 // pred_region
        _
      $region24: #{basic_transconv2d.3} parent=11 // pred_fallthru
        _
    $region12: #{basic_transconv2d.3} parent=5 // pred_fallthru
      _
    %p149 = scmp.lt.s32.totalorder %s10, 2
    // Predicated region
    $region25: #{basic_transconv2d.3} parent=5 // pred_check
      %p150 = pneg %p149
    $region26: #{basic_transconv2d.3} parent=5 // pred_check_branch
      %152 = sbr.rel (%p150) target = $region28
    $region27: #{basic_transconv2d.3} parent=5 // pred_region
      // Predicated region
      $region29: #{basic_transconv2d.3} parent=27 // pred_check
        %p153 = pneg %p30
      $region30: #{basic_transconv2d.3} parent=27 // pred_check_branch
        %155 = sbr.rel (%p153) target = $region32
      $region31: #{basic_transconv2d.3} parent=27 // pred_region
        %s156 = smul.u32 32, %s10
        %p157 = scmp.lt.s32.totalorder %s156, 63
        %s158 = scalar_select %p157, %s156, 63
        %s159 = smul.addr %s158, 4
        %s160 = scalar_lea.vmem %s0, %s159
        %s161 = smul.u32 32, %s10
      $region32: #{basic_transconv2d.3} parent=27 // pred_fallthru
        _
    $region28: #{basic_transconv2d.3} parent=5 // pred_fallthru
      _
    %p162 = scmp.le.s32.totalorder 1, %s10
    %p163 = scmp.lt.s32.totalorder %s10, 3
    %p164 = pnand %p162, %p163
    %p165 = pneg %p164
    // Predicated region
    $region33: #{basic_transconv2d.3} parent=5 // pred_check
      _
    $region34: #{basic_transconv2d.3} parent=5 // pred_check_branch
      %167 = sbr.rel (%p164) target = $region36
    $region35: #{basic_transconv2d.3} parent=5 // pred_region
      %s168 = ssub.s32 %s10, 1
      %s169 = smul.u32 32, %s15
      %p170 = scmp.lt.s32.totalorder %s169, 63
      %s171 = scalar_select %p170, %s169, 63
      %s172 = smul.addr %s171, 4
      %s173 = scalar_lea.vmem %s0, %s172
      %p174 = pneg %p36
      %p175 = pneg %p33
      %p176 = pneg %p57
      %p177 = pneg %p54
      %p178 = pneg %p78
      %p179 = pneg %p75
      %p180 = pneg %p99
      %p181 = pneg %p96
      %p182 = pneg %p125
      %p183 = pneg %p122
      %s184 = smul.u32 32, %s15
      %p185 = scmp.lt.s32.totalorder %s184, 63
      %s186 = scalar_select %p185, %s184, 63
      %s187 = smul.addr %s186, 8
      %s188 = scalar_lea.vmem %s4, %s187
      %s189 = smul.u32 32, %s15
      %p190 = scmp.lt.s32.totalorder %s189, 63
      %s191 = scalar_select %p190, %s189, 63
      %s192 = smul.addr %s191, 4
      %s193 = scalar_lea.vmem %s0, %s192
      %s194 = smul.u32 32, %s15
      %s195 = smul.u32 32, %s15
      %p196 = scmp.lt.s32.totalorder %s195, 63
      %s197 = scalar_select %p196, %s195, 63
      %s198 = smul.addr %s197, 8
      %s199 = scalar_lea.vmem %s4, %s198
      %s200 = smul.u32 32, %s15
      %v202 = vld [vmem:[%s193] sm:$0xf]
      %v203 = vld [vmem:[%s193 + $0x4] sm:$0xf]
      %v204 = vld [vmem:[%s193 + $0x8] sm:$0xf]
      %v205 = vld [vmem:[%s193 + $0xc] sm:$0xf]
      %v206 = vld [vmem:[%s193 + $0x10] sm:$0xf]
      %v207 = vld [vmem:[%s193 + $0x14] sm:$0xf]
      %v208 = vld [vmem:[%s193 + $0x18] sm:$0xf]
      %v209 = vld [vmem:[%s193 + $0x1c] sm:$0xf]
      %v210 = vld [vmem:[%s193 + $0x20] sm:$0xf]
      %v211 = vld [vmem:[%s193 + $0x24] sm:$0xf]
      %v212 = vld [vmem:[%s193 + $0x28] sm:$0xf]
      %v213 = vld [vmem:[%s193 + $0x2c] sm:$0xf]
      %v214 = vld [vmem:[%s193 + $0x30] sm:$0xf]
      %v215 = vld [vmem:[%s193 + $0x34] sm:$0xf]
      %v216 = vld [vmem:[%s193 + $0x38] sm:$0xf]
      %v217 = vld [vmem:[%s193 + $0x3c] sm:$0xf]
      %v218 = vld [vmem:[%s193 + $0x40] sm:$0xf]
      %v219 = vld [vmem:[%s193 + $0x44] sm:$0xf]
      %v220 = vld [vmem:[%s193 + $0x48] sm:$0xf]
      %v221 = vld [vmem:[%s193 + $0x4c] sm:$0xf]
      %v222 = vld [vmem:[%s193 + $0x50] sm:$0xf]
      %v223 = vld [vmem:[%s193 + $0x54] sm:$0xf]
      %v224 = vld [vmem:[%s193 + $0x58] sm:$0xf]
      %v225 = vld [vmem:[%s193 + $0x5c] sm:$0xf]
      %v226 = vld [vmem:[%s193 + $0x60] sm:$0xf]
      %v227 = vld [vmem:[%s193 + $0x64] sm:$0xf]
      %v228 = vld [vmem:[%s193 + $0x68] sm:$0xf]
      %v229 = vld [vmem:[%s193 + $0x6c] sm:$0xf]
      %v230 = vld [vmem:[%s193 + $0x70] sm:$0xf]
      %v231 = vld [vmem:[%s193 + $0x74] sm:$0xf]
      %v232 = vld [vmem:[%s193 + $0x78] sm:$0xf]
      %v233 = vld [vmem:[%s193 + $0x7c] sm:$0xf]
      %v234 = vld [vmem:[%s1] sm:$0x3]
      %v267 = vunpack.c.l.b16 %v202
      %v268 = vunpack.c.l.b16 %v203
      %v269 = vunpack.c.l.b16 %v204
      %v270 = vunpack.c.l.b16 %v205
      %v271 = vunpack.c.l.b16 %v206
      %v272 = vunpack.c.l.b16 %v207
      %v273 = vunpack.c.l.b16 %v208
      %v274 = vunpack.c.l.b16 %v209
      %v275 = vunpack.c.l.b16 %v210
      %v276 = vunpack.c.l.b16 %v211
      %v277 = vunpack.c.l.b16 %v212
      %v278 = vunpack.c.l.b16 %v213
      %v279 = vunpack.c.l.b16 %v214
      %v280 = vunpack.c.l.b16 %v215
      %v281 = vunpack.c.l.b16 %v216
      %v282 = vunpack.c.l.b16 %v217
      %v283 = vunpack.c.l.b16 %v218
      %v284 = vunpack.c.l.b16 %v219
      %v285 = vunpack.c.l.b16 %v220
      %v286 = vunpack.c.l.b16 %v221
      %v287 = vunpack.c.l.b16 %v222
      %v288 = vunpack.c.l.b16 %v223
      %v289 = vunpack.c.l.b16 %v224
      %v290 = vunpack.c.l.b16 %v225
      %v291 = vunpack.c.l.b16 %v226
      %v292 = vunpack.c.l.b16 %v227
      %v293 = vunpack.c.l.b16 %v228
      %v294 = vunpack.c.l.b16 %v229
      %v295 = vunpack.c.l.b16 %v230
      %v296 = vunpack.c.l.b16 %v231
      %v297 = vunpack.c.l.b16 %v232
      %v298 = vunpack.c.l.b16 %v233
      %v299 = vpack.c.b16 %v268, %v267
      %v300 = vpack.c.b16 %v270, %v269
      %v301 = vpack.c.b16 %v272, %v271
      %v302 = vpack.c.b16 %v274, %v273
      %v303 = vpack.c.b16 %v276, %v275
      %v304 = vpack.c.b16 %v278, %v277
      %v305 = vpack.c.b16 %v280, %v279
      %v306 = vpack.c.b16 %v282, %v281
      %v307 = vpack.c.b16 %v284, %v283
      %v308 = vpack.c.b16 %v286, %v285
      %v309 = vpack.c.b16 %v288, %v287
      %v310 = vpack.c.b16 %v290, %v289
      %v311 = vpack.c.b16 %v292, %v291
      %v312 = vpack.c.b16 %v294, %v293
      %v313 = vpack.c.b16 %v296, %v295
      %v314 = vpack.c.b16 %v298, %v297
      %vm315 = vcmask 31744
      %v317 = vsel %vm315, %v299, 0
      %v320 = vsel %vm315, %v300, 0
      %v323 = vsel %vm315, %v301, 0
      %v326 = vsel %vm315, %v302, 0
      %v329 = vsel %vm315, %v303, 0
      %v332 = vsel %vm315, %v304, 0
      %v335 = vsel %vm315, %v305, 0
      %v338 = vsel %vm315, %v306, 0
      %v341 = vsel %vm315, %v307, 0
      %v344 = vsel %vm315, %v308, 0
      %v347 = vsel %vm315, %v309, 0
      %v350 = vsel %vm315, %v310, 0
      %v353 = vsel %vm315, %v311, 0
      %v356 = vsel %vm315, %v312, 0
      %v359 = vsel %vm315, %v313, 0
      %v362 = vsel %vm315, %v314, 0
      %vm364 = vcmask 1041408
      %v366 = vsel %vm364, %v234, 0
      %368 = vmatprep.subr.bf16.mxu0 0
      %369 = vmatpush1.bf16.msra.mxu0 %v366
      %370 = vmatprep.subr.bf16.mxu0 0
      %371 = vmatpush1.bf16.msra.mxu0 0
      %372 = vmatprep.subr.bf16.mxu0 0
      %373 = vmatpush1.bf16.msra.mxu0 0
      %374 = vmatprep.subr.bf16.mxu0 0
      %375 = vmatpush1.bf16.msra.mxu0 0
      %376 = vmatprep.subr.bf16.mxu0 0
      %377 = vmatpush1.bf16.msra.mxu0 0
      %378 = vmatprep.subr.bf16.mxu0 0
      %379 = vmatpush1.bf16.msra.mxu0 0
      %380 = vmatprep.subr.bf16.mxu0 0
      %381 = vmatpush1.bf16.msra.mxu0 0
      %382 = vmatprep.subr.bf16.mxu0 0
      %383 = vmatpush1.bf16.msra.mxu0 0
      %384 = vmatprep.subr.bf16.mxu0 0
      %385 = vmatpush1.bf16.msra.mxu0 0
      %386 = vmatprep.subr.bf16.mxu0 0
      %387 = vmatpush1.bf16.msra.mxu0 0
      %388 = vmatprep.subr.bf16.mxu0 0
      %389 = vmatpush1.bf16.msra.mxu0 0
      %390 = vmatprep.subr.bf16.mxu0 0
      %391 = vmatpush1.bf16.msra.mxu0 0
      %392 = vmatprep.subr.bf16.mxu0 0
      %393 = vmatpush1.bf16.msra.mxu0 0
      %394 = vmatprep.subr.bf16.mxu0 0
      %395 = vmatpush1.bf16.msra.mxu0 0
      %396 = vmatprep.subr.bf16.mxu0 0
      %397 = vmatpush1.bf16.msra.mxu0 0
      %398 = vmatprep.subr.bf16.mxu0 0
      %399 = vmatpush1.bf16.msra.mxu0 0
      %400 = vmatprep.mubr.bf16.mxu0 0
      %401 = vmatmul.mubr.bf16.gmra.mrb[0].mxu0 %v317
      %v402 = vpop.f32.mrb[0].mxu0
      %v403 = vadd.f32 0.0, %v402
      %v404 = vpop.f32.mrb[0].mxu0
      %v405 = vpop.f32.mrb[0].mxu0
      %v406 = vadd.f32 0.0, %v405
      %v407 = vpop.f32.mrb[0].mxu0
      %408 = vmatprep.mubr.bf16.mxu0 0
      %409 = vmatmul.mubr.bf16.gmra.mrb[0].mxu0 %v320
      %v410 = vpop.f32.mrb[0].mxu0
      %v411 = vadd.f32 0.0, %v410
      %v412 = vpop.f32.mrb[0].mxu0
      %v413 = vpop.f32.mrb[0].mxu0
      %v414 = vadd.f32 0.0, %v413
      %v415 = vpop.f32.mrb[0].mxu0
      %416 = vmatprep.mubr.bf16.mxu0 0
      %417 = vmatmul.mubr.bf16.gmra.mrb[0].mxu0 %v323
      %v418 = vpop.f32.mrb[0].mxu0
      %v419 = vadd.f32 0.0, %v418
      %v420 = vpop.f32.mrb[0].mxu0
      %v421 = vpop.f32.mrb[0].mxu0
      %v422 = vadd.f32 0.0, %v421
      %v423 = vpop.f32.mrb[0].mxu0
      %424 = vmatprep.mubr.bf16.mxu0 0
      %425 = vmatmul.mubr.bf16.gmra.mrb[0].mxu0 %v326
      %v426 = vpop.f32.mrb[0].mxu0
      %v427 = vadd.f32 0.0, %v426
      %v428 = vpop.f32.mrb[0].mxu0
      %v429 = vpop.f32.mrb[0].mxu0
      %v430 = vadd.f32 0.0, %v429
      %v431 = vpop.f32.mrb[0].mxu0
      %432 = vmatprep.mubr.bf16.mxu0 0
      %433 = vmatmul.mubr.bf16.gmra.mrb[0].mxu0 %v329
      %v434 = vpop.f32.mrb[0].mxu0
      %v435 = vadd.f32 0.0, %v434
      %v436 = vpop.f32.mrb[0].mxu0
      %v437 = vpop.f32.mrb[0].mxu0
      %v438 = vadd.f32 0.0, %v437
      %v439 = vpop.f32.mrb[0].mxu0
      %440 = vmatprep.mubr.bf16.mxu0 0
      %441 = vmatmul.mubr.bf16.gmra.mrb[0].mxu0 %v332
      %v442 = vpop.f32.mrb[0].mxu0
      %v443 = vadd.f32 0.0, %v442
      %v444 = vpop.f32.mrb[0].mxu0
      %v445 = vpop.f32.mrb[0].mxu0
      %v446 = vadd.f32 0.0, %v445
      %v447 = vpop.f32.mrb[0].mxu0
      %448 = vmatprep.mubr.bf16.mxu0 0
      %449 = vmatmul.mubr.bf16.gmra.mrb[0].mxu0 %v335
      %v450 = vpop.f32.mrb[0].mxu0
      %v451 = vadd.f32 0.0, %v450
      %v452 = vpop.f32.mrb[0].mxu0
      %v453 = vpop.f32.mrb[0].mxu0
      %v454 = vadd.f32 0.0, %v453
      %v455 = vpop.f32.mrb[0].mxu0
      %456 = vmatprep.mubr.bf16.mxu0 0
      %457 = vmatmul.mubr.bf16.gmra.mrb[0].mxu0 %v338
      %v458 = vpop.f32.mrb[0].mxu0
      %v459 = vadd.f32 0.0, %v458
      %v460 = vpop.f32.mrb[0].mxu0
      %v461 = vpop.f32.mrb[0].mxu0
      %v462 = vadd.f32 0.0, %v461
      %v463 = vpop.f32.mrb[0].mxu0
      %464 = vmatprep.mubr.bf16.mxu0 0
      %465 = vmatmul.mubr.bf16.gmra.mrb[0].mxu0 %v341
      %v466 = vpop.f32.mrb[0].mxu0
      %v467 = vadd.f32 0.0, %v466
      %v468 = vpop.f32.mrb[0].mxu0
      %v469 = vpop.f32.mrb[0].mxu0
      %v470 = vadd.f32 0.0, %v469
      %v471 = vpop.f32.mrb[0].mxu0
      %472 = vmatprep.mubr.bf16.mxu0 0
      %473 = vmatmul.mubr.bf16.gmra.mrb[0].mxu0 %v344
      %v474 = vpop.f32.mrb[0].mxu0
      %v475 = vadd.f32 0.0, %v474
      %v476 = vpop.f32.mrb[0].mxu0
      %v477 = vpop.f32.mrb[0].mxu0
      %v478 = vadd.f32 0.0, %v477
      %v479 = vpop.f32.mrb[0].mxu0
      %480 = vmatprep.mubr.bf16.mxu0 0
      %481 = vmatmul.mubr.bf16.gmra.mrb[0].mxu0 %v347
      %v482 = vpop.f32.mrb[0].mxu0
      %v483 = vadd.f32 0.0, %v482
      %v484 = vpop.f32.mrb[0].mxu0
      %v485 = vpop.f32.mrb[0].mxu0
      %v486 = vadd.f32 0.0, %v485
      %v487 = vpop.f32.mrb[0].mxu0
      %488 = vmatprep.mubr.bf16.mxu0 0
      %489 = vmatmul.mubr.bf16.gmra.mrb[0].mxu0 %v350
      %v490 = vpop.f32.mrb[0].mxu0
      %v491 = vadd.f32 0.0, %v490
      %v492 = vpop.f32.mrb[0].mxu0
      %v493 = vpop.f32.mrb[0].mxu0
      %v494 = vadd.f32 0.0, %v493
      %v495 = vpop.f32.mrb[0].mxu0
      %496 = vmatprep.mubr.bf16.mxu0 0
      %497 = vmatmul.mubr.bf16.gmra.mrb[0].mxu0 %v353
      %v498 = vpop.f32.mrb[0].mxu0
      %v499 = vadd.f32 0.0, %v498
      %v500 = vpop.f32.mrb[0].mxu0
      %v501 = vpop.f32.mrb[0].mxu0
      %v502 = vadd.f32 0.0, %v501
      %v503 = vpop.f32.mrb[0].mxu0
      %504 = vmatprep.mubr.bf16.mxu0 0
      %505 = vmatmul.mubr.bf16.gmra.mrb[0].mxu0 %v356
      %v506 = vpop.f32.mrb[0].mxu0
      %v507 = vadd.f32 0.0, %v506
      %v508 = vpop.f32.mrb[0].mxu0
      %v509 = vpop.f32.mrb[0].mxu0
      %v510 = vadd.f32 0.0, %v509
      %v511 = vpop.f32.mrb[0].mxu0
      %512 = vmatprep.mubr.bf16.mxu0 0
      %513 = vmatmul.mubr.bf16.gmra.mrb[0].mxu0 %v359
      %v514 = vpop.f32.mrb[0].mxu0
      %v515 = vadd.f32 0.0, %v514
      %v516 = vpop.f32.mrb[0].mxu0
      %v517 = vpop.f32.mrb[0].mxu0
      %v518 = vadd.f32 0.0, %v517
      %v519 = vpop.f32.mrb[0].mxu0
      %520 = vmatprep.mubr.bf16.mxu0 0
      %521 = vmatmul.mubr.bf16.gmra.mrb[0].mxu0 %v362
      %v522 = vpop.f32.mrb[0].mxu0
      %v523 = vadd.f32 0.0, %v522
      %v524 = vpop.f32.mrb[0].mxu0
      %v525 = vpop.f32.mrb[0].mxu0
      %v526 = vadd.f32 0.0, %v525
      %v527 = vpop.f32.mrb[0].mxu0
      %528 = vdwg.mxu0
      %v529 = vld [vmem:[%s2] sm:$0x1]
      %v531 = vlaneseq
      %v532 = vshrl.u32 %v531, 7
      %v533 = vsub.s32 0, %v532
      %v534 = vrot.slane %v529, %v533
      %v536 = vmul.f32 %v403, %v534
      %v537 = vmul.f32 %v406, %v534
      %v538 = vmul.f32 %v411, %v534
      %v539 = vmul.f32 %v414, %v534
      %v540 = vmul.f32 %v419, %v534
      %v541 = vmul.f32 %v422, %v534
      %v542 = vmul.f32 %v427, %v534
      %v543 = vmul.f32 %v430, %v534
      %v544 = vmul.f32 %v435, %v534
      %v545 = vmul.f32 %v438, %v534
      %v546 = vmul.f32 %v443, %v534
      %v547 = vmul.f32 %v446, %v534
      %v548 = vmul.f32 %v451, %v534
      %v549 = vmul.f32 %v454, %v534
      %v550 = vmul.f32 %v459, %v534
      %v551 = vmul.f32 %v462, %v534
      %v552 = vmul.f32 %v467, %v534
      %v553 = vmul.f32 %v470, %v534
      %v554 = vmul.f32 %v475, %v534
      %v555 = vmul.f32 %v478, %v534
      %v556 = vmul.f32 %v483, %v534
      %v557 = vmul.f32 %v486, %v534
      %v558 = vmul.f32 %v491, %v534
      %v559 = vmul.f32 %v494, %v534
      %v560 = vmul.f32 %v499, %v534
      %v561 = vmul.f32 %v502, %v534
      %v562 = vmul.f32 %v507, %v534
      %v563 = vmul.f32 %v510, %v534
      %v564 = vmul.f32 %v515, %v534
      %v565 = vmul.f32 %v518, %v534
      %v566 = vmul.f32 %v523, %v534
      %v567 = vmul.f32 %v526, %v534
      %v568 = vld [vmem:[%s3] sm:$0x1]
      %v570 = vlaneseq
      %v571 = vshrl.u32 %v570, 7
      %v572 = vsub.s32 0, %v571
      %v573 = vrot.slane %v568, %v572
      %v575 = vadd.f32 %v536, %v573
      %v576 = vadd.f32 %v537, %v573
      %v577 = vadd.f32 %v538, %v573
      %v578 = vadd.f32 %v539, %v573
      %v579 = vadd.f32 %v540, %v573
      %v580 = vadd.f32 %v541, %v573
      %v581 = vadd.f32 %v542, %v573
      %v582 = vadd.f32 %v543, %v573
      %v583 = vadd.f32 %v544, %v573
      %v584 = vadd.f32 %v545, %v573
      %v585 = vadd.f32 %v546, %v573
      %v586 = vadd.f32 %v547, %v573
      %v587 = vadd.f32 %v548, %v573
      %v588 = vadd.f32 %v549, %v573
      %v589 = vadd.f32 %v550, %v573
      %v590 = vadd.f32 %v551, %v573
      %v591 = vadd.f32 %v552, %v573
      %v592 = vadd.f32 %v553, %v573
      %v593 = vadd.f32 %v554, %v573
      %v594 = vadd.f32 %v555, %v573
      %v595 = vadd.f32 %v556, %v573
      %v596 = vadd.f32 %v557, %v573
      %v597 = vadd.f32 %v558, %v573
      %v598 = vadd.f32 %v559, %v573
      %v599 = vadd.f32 %v560, %v573
      %v600 = vadd.f32 %v561, %v573
      %v601 = vadd.f32 %v562, %v573
      %v602 = vadd.f32 %v563, %v573
      %v603 = vadd.f32 %v564, %v573
      %v604 = vadd.f32 %v565, %v573
      %v605 = vadd.f32 %v566, %v573
      %v606 = vadd.f32 %v567, %v573
      %v607 = vmax.f32 %v575, 0.0
      %v608 = vmax.f32 %v576, 0.0
      %v609 = vmax.f32 %v577, 0.0
      %v610 = vmax.f32 %v578, 0.0
      %v611 = vmax.f32 %v579, 0.0
      %v612 = vmax.f32 %v580, 0.0
      %v613 = vmax.f32 %v581, 0.0
      %v614 = vmax.f32 %v582, 0.0
      %v615 = vmax.f32 %v583, 0.0
      %v616 = vmax.f32 %v584, 0.0
      %v617 = vmax.f32 %v585, 0.0
      %v618 = vmax.f32 %v586, 0.0
      %v619 = vmax.f32 %v587, 0.0
      %v620 = vmax.f32 %v588, 0.0
      %v621 = vmax.f32 %v589, 0.0
      %v622 = vmax.f32 %v590, 0.0
      %v623 = vmax.f32 %v591, 0.0
      %v624 = vmax.f32 %v592, 0.0
      %v625 = vmax.f32 %v593, 0.0
      %v626 = vmax.f32 %v594, 0.0
      %v627 = vmax.f32 %v595, 0.0
      %v628 = vmax.f32 %v596, 0.0
      %v629 = vmax.f32 %v597, 0.0
      %v630 = vmax.f32 %v598, 0.0
      %v631 = vmax.f32 %v599, 0.0
      %v632 = vmax.f32 %v600, 0.0
      %v633 = vmax.f32 %v601, 0.0
      %v634 = vmax.f32 %v602, 0.0
      %v635 = vmax.f32 %v603, 0.0
      %v636 = vmax.f32 %v604, 0.0
      %v637 = vmax.f32 %v605, 0.0
      %v638 = vmax.f32 %v606, 0.0
      %vm639 = vcmask 261120
      %640 = vst.msk [vmem:[%s199] sm:$0xff] %vm639, %v607
      %641 = vst.msk [vmem:[%s199 + $0x8] sm:$0xff] %vm639, %v608
      %642 = vst.msk [vmem:[%s199 + $0x10] sm:$0xff] %vm639, %v609
      %643 = vst.msk [vmem:[%s199 + $0x18] sm:$0xff] %vm639, %v610
      %644 = vst.msk [vmem:[%s199 + $0x20] sm:$0xff] %vm639, %v611
      %645 = vst.msk [vmem:[%s199 + $0x28] sm:$0xff] %vm639, %v612
      %646 = vst.msk [vmem:[%s199 + $0x30] sm:$0xff] %vm639, %v613
      %647 = vst.msk [vmem:[%s199 + $0x38] sm:$0xff] %vm639, %v614
      %648 = vst.msk [vmem:[%s199 + $0x40] sm:$0xff] %vm639, %v615
      %649 = vst.msk [vmem:[%s199 + $0x48] sm:$0xff] %vm639, %v616
      %650 = vst.msk [vmem:[%s199 + $0x50] sm:$0xff] %vm639, %v617
      %651 = vst.msk [vmem:[%s199 + $0x58] sm:$0xff] %vm639, %v618
      %652 = vst.msk [vmem:[%s199 + $0x60] sm:$0xff] %vm639, %v619
      %653 = vst.msk [vmem:[%s199 + $0x68] sm:$0xff] %vm639, %v620
      %654 = vst.msk [vmem:[%s199 + $0x70] sm:$0xff] %vm639, %v621
      %655 = vst.msk [vmem:[%s199 + $0x78] sm:$0xff] %vm639, %v622
      %656 = vst.msk [vmem:[%s199 + $0x80] sm:$0xff] %vm639, %v623
      %657 = vst.msk [vmem:[%s199 + $0x88] sm:$0xff] %vm639, %v624
      %658 = vst.msk [vmem:[%s199 + $0x90] sm:$0xff] %vm639, %v625
      %659 = vst.msk [vmem:[%s199 + $0x98] sm:$0xff] %vm639, %v626
      %660 = vst.msk [vmem:[%s199 + $0xa0] sm:$0xff] %vm639, %v627
      %661 = vst.msk [vmem:[%s199 + $0xa8] sm:$0xff] %vm639, %v628
      %662 = vst.msk [vmem:[%s199 + $0xb0] sm:$0xff] %vm639, %v629
      %663 = vst.msk [vmem:[%s199 + $0xb8] sm:$0xff] %vm639, %v630
      %664 = vst.msk [vmem:[%s199 + $0xc0] sm:$0xff] %vm639, %v631
      %665 = vst.msk [vmem:[%s199 + $0xc8] sm:$0xff] %vm639, %v632
      %666 = vst.msk [vmem:[%s199 + $0xd0] sm:$0xff] %vm639, %v633
      %667 = vst.msk [vmem:[%s199 + $0xd8] sm:$0xff] %vm639, %v634
      %668 = vst.msk [vmem:[%s199 + $0xe0] sm:$0xff] %vm639, %v635
      %669 = vst.msk [vmem:[%s199 + $0xe8] sm:$0xff] %vm639, %v636
      %670 = vst.msk [vmem:[%s199 + $0xf0] sm:$0xff] %vm639, %v637
      %671 = vst.msk [vmem:[%s199 + $0xf8] sm:$0xff] %vm639, %v638
      %s672 = smul.u32 32, %s15
      %p673 = scmp.lt.s32.totalorder %s672, 63
      %s674 = scalar_select %p673, %s672, 63
      %s675 = smul.addr %s674, 8
      %s676 = scalar_lea.vmem %s4, %s675
      // Predicated region
      $region37: #{basic_transconv2d.3} parent=35 // pred_check
        %p677 = pneg %p122
      $region38: #{basic_transconv2d.3} parent=35 // pred_check_branch
        %679 = sbr.rel (%p677) target = $region40
      $region39: #{basic_transconv2d.3} parent=35 // pred_region
        %s680 = smul.u32 32, %s15
      $region40: #{basic_transconv2d.3} parent=35 // pred_fallthru
        _
    $region36: #{basic_transconv2d.3} parent=5 // pred_fallthru
      _
    %p681 = scmp.le.s32.totalorder 2, %s10
    // Predicated region
    $region41: #{basic_transconv2d.3} parent=5 // pred_check
      %p682 = pneg %p681
    $region42: #{basic_transconv2d.3} parent=5 // pred_check_branch
      %684 = sbr.rel (%p682) target = $region44
    $region43: #{basic_transconv2d.3} parent=5 // pred_region
      %s685 = ssub.s32 %s10, 2
      // Predicated region
      $region45: #{basic_transconv2d.3} parent=43 // pred_check
        %p686 = pneg %p128
      $region46: #{basic_transconv2d.3} parent=43 // pred_check_branch
        %688 = sbr.rel (%p686) target = $region48
      $region47: #{basic_transconv2d.3} parent=43 // pred_region
        %s689 = smul.u32 32, %s16
        %p690 = scmp.lt.s32.totalorder %s689, 63
        %s691 = scalar_select %p690, %s689, 63
        %s692 = smul.addr %s691, 8
        %s693 = scalar_lea.vmem %s4, %s692
      $region48: #{basic_transconv2d.3} parent=43 // pred_fallthru
        _
    $region44: #{basic_transconv2d.3} parent=5 // pred_fallthru
      _
  $region6: #{basic_transconv2d.3} parent=0 // loop_footer
    %s14 = sadd.s32 1, %s10
  $region7: #{basic_transconv2d.3} parent=0 // loop_footer_branch
    %9 = sbr.rel target = $region3
  $region8: #{basic_transconv2d.3} parent=0 // loop_exit
    _

</llo_original>
